<compile_context>
chip_gen: v7x
topology: tpu7x:2x2x1
jax: 0.10.0
libtpu: 0.0.40
codegen_flags: <defaults>
</compile_context>

<pallas_src>
import jax
import jax.numpy as jnp
from jax.experimental import pallas as pl
from jax.experimental.pallas import tpu as pltpu

_BN_EPS = 1e-5


# ------------------------------ sizing helpers ------------------------------ #

def _round_up(x, m):
    return ((x + m - 1) // m) * m


def _vmem_limit_bytes():
    """Generation-aware VMEM limit: ~3/4 of physical capacity, capped at 100 MiB."""
    default = 64 * 1024 * 1024
    try:
        cap = int(getattr(pltpu.get_tpu_info(), "vmem_capacity_bytes", default))
        if cap <= 0:
            cap = default
    except Exception:
        cap = default
    cap = max(cap, 16 * 1024 * 1024)
    return int(min(cap * 3 // 4, 100 * 1024 * 1024))


def _pick_tile_n(n_pad, c_max, tile_budget_bytes, live_tensors=6):
    """Largest multiple-of-128 divisor of n_pad whose f32 working set fits the budget."""
    cap = tile_budget_bytes // (live_tensors * max(c_max, 8) * 4)
    cap = max(128, (cap // 128) * 128)
    cap = min(cap, n_pad, 32768)
    best, d = 128, 128
    while d <= cap:
        if n_pad % d == 0:
            best = d
        d += 128
    return best


# -------------------------------- kernel math -------------------------------- #

def _linear(w_ref, act, matmul_dtype):
    """y = W @ act (no bias), act [Cin, TN] lane-dense, f32 accumulation on the MXU."""
    cout, cin = w_ref.shape
    if cin < 8:
        # Fallback for pathologically narrow intermediate layers (first layer's Cin is
        # zero-padded to >=8 in the wrapper so it takes the MXU path).
        w = w_ref[...].astype(jnp.float32)
        y = w[:, 0:1] * act[0:1, :]
        for kk in range(1, cin):
            y = y + w[:, kk:kk + 1] * act[kk:kk + 1, :]
        return y
    return jnp.dot(w_ref[...].astype(matmul_dtype), act.astype(matmul_dtype),
                   preferred_element_type=jnp.float32)


def _make_stats_kernel(n_layers, cins, couts, c0p, m_total, n_true, tn,
                       matmul_dtype, eps=_BN_EPS):
    """Pass p (grid axis 0) accumulates global per-channel sum/sumsq of layer p's
    pre-activation and finalizes scale/shift on the last tile; layers >p are skipped."""
    inv_m = 1.0 / float(m_total)
    needs_mask = (n_true % tn) != 0          # padded lanes exist on the point axis

    def kernel(*refs):
        k = 0
        x_ref = refs[k]; k += 1
        w_refs = refs[k:k + n_layers]; k += n_layers
        g_refs = refs[k:k + n_layers]; k += n_layers
        be_refs = refs[k:k + n_layers]; k += n_layers
        sc_refs = refs[k:k + n_layers]; k += n_layers        # outputs: BN scale
        sh_refs = refs[k:k + n_layers]; k += n_layers        # outputs: BN shift
        sum_refs = refs[k:k + n_layers]; k += n_layers       # scratch
        sq_refs = refs[k:k + n_layers]; k += n_layers        # scratch
        act_ref = refs[k]                                    # scratch [Cmax, TN]

        p = pl.program_id(0)
        b = pl.program_id(1)
        t = pl.program_id(2)
        first = jnp.logical_and(jnp.logical_and(p == 0, b == 0), t == 0)
        last_tile = jnp.logical_and(b == pl.num_programs(1) - 1,
                                    t == pl.num_programs(2) - 1)

        @pl.when(first)
        def _init():
            for i in range(n_layers):
                sum_refs[i][...] = jnp.zeros_like(sum_refs[i])
                sq_refs[i][...] = jnp.zeros_like(sq_refs[i])

        if needs_mask:
            lane = jax.lax.broadcasted_iota(jnp.int32, (1, tn), 1)
            valid = ((t * tn + lane) < n_true).astype(jnp.float32)
        else:
            valid = None

        # Stage the running activation through VMEM so it crosses pl.when boundaries.
        act_ref[0:c0p, :] = x_ref[...].astype(jnp.float32)

        for i in range(n_layers):
            def layer_body(i=i):
                a = act_ref[0:cins[i], :]
                y = _linear(w_refs[i], a, matmul_dtype)    # bias is absorbed by BN

                @pl.when(p == i)
                def _accumulate():
                    ym = y if valid is None else y * valid
                    sum_refs[i][...] += jnp.sum(ym, axis=1, keepdims=True)
                    sq_refs[i][...] += jnp.sum(ym * ym, axis=1, keepdims=True)

                    @pl.when(last_tile)
                    def _finalize():
                        # TODO(synk): uncentered E[x^2]-E[x]^2 in f32; use a centered or
                        # compensated accumulation for very large B*N.
                        mean = sum_refs[i][...] * inv_m
                        var = jnp.maximum(sq_refs[i][...] * inv_m - mean * mean, 0.0)
                        scale = g_refs[i][...] * jax.lax.rsqrt(var + eps)
                        sc_refs[i][...] = scale
                        sh_refs[i][...] = be_refs[i][...] - mean * scale

                if i < n_layers - 1:
                    @pl.when(p > i)                       # only needed by deeper passes
                    def _apply():
                        act_ref[0:couts[i], :] = jnp.sin(
                            y * sc_refs[i][...] + sh_refs[i][...])

            if i == 0:
                layer_body()                               # p >= 0 always holds
            else:
                pl.when(p >= i)(layer_body)                # skip dead downstream layers

    return kernel


def _make_apply_kernel(n_layers, matmul_dtype):
    """Straight-line fused MLP: act = sin(W_i @ act + v_i).  With BN, W_i already has the
    BN scale folded in and v_i is the BN shift; without BN, v_i is the conv/linear bias."""
    def kernel(*refs):
        k = 0
        x_ref = refs[k]; k += 1
        w_refs = refs[k:k + n_layers]; k += n_layers
        v_refs = refs[k:k + n_layers]; k += n_layers
        o_ref = refs[k]

        act = x_ref[...].astype(jnp.float32)
        for i in range(n_layers):
            y = _linear(w_refs[i], act, matmul_dtype) + v_refs[i][...]
            act = jnp.sin(y)
        o_ref[...] = act.astype(o_ref.dtype)

    return kernel


# ---------------------------------- wrapper ---------------------------------- #

def _fused_mlp_ncw(params, x, if_bn=True, matmul_dtype=jnp.float32, out_dtype=None):
    """x: [B, Cin, N] -> [B, Cout, N]."""
    B, C0, N = (int(s) for s in x.shape)
    n_layers = len(params)
    couts = [int(lay["W"].shape[0]) for lay in params]
    cins_raw = [int(lay["W"].shape[1]) for lay in params]
    assert cins_raw[0] == C0
    out_dtype = x.dtype if out_dtype is None else out_dtype

    # Lane-pad the point axis (unmasked stores + tiling); pad Cin to >=8 for the MXU.
    n_pad = _round_up(N, 128)
    c0p = _round_up(C0, 8)
    cins = [c0p] + couts[:-1]
    c_max = max([c0p] + couts)

    vmem_limit = _vmem_limit_bytes()
    tn = _pick_tile_n(n_pad, c_max, min(vmem_limit, 64 * 1024 * 1024) // 3)
    n_tiles = n_pad // tn
    m_total = B * N

    x_p = x
    if n_pad != N or c0p != C0:
        x_p = jnp.pad(x, ((0, 0), (0, c0p - C0), (0, n_pad - N)))
    w0 = params[0]["W"]
    if c0p != C0:
        w0 = jnp.pad(w0, ((0, 0), (0, c0p - C0)))
    weights = [w0] + [lay["W"] for lay in params[1:]]

    def _full3(arr):
        return pl.BlockSpec(tuple(int(s) for s in arr.shape), lambda p, b, t: (0, 0))

    def _full2(arr):
        return pl.BlockSpec(tuple(int(s) for s in arr.shape), lambda b, t: (0, 0))

    def _cparams(dims):
        return pltpu.CompilerParams(dimension_semantics=dims,
                                    vmem_limit_bytes=vmem_limit)

    dot_flops = [2 * ci * co for ci, co in zip(cins, couts)]

    if if_bn:
        # -------- stats kernel: global BN stats -> per-layer scale/shift (tiny) -------- #
        stats_kernel = _make_stats_kernel(n_layers, cins, couts, c0p, m_total, N, tn,
                                          matmul_dtype)
        in_specs = [pl.BlockSpec((pl.Squeezed(), c0p, tn), lambda p, b, t: (b, 0, t))]
        inputs = [x_p]
        for w in weights:
            in_specs.append(_full3(w)); inputs.append(w)
        for lay in params:
            in_specs.append(_full3(lay["gamma"])); inputs.append(lay["gamma"])
        for lay in params:
            in_specs.append(_full3(lay["beta"])); inputs.append(lay["beta"])

        out_shape = [jax.ShapeDtypeStruct((c, 1), jnp.float32) for c in couts] * 2
        out_specs = [pl.BlockSpec((c, 1), lambda p, b, t: (0, 0)) for c in couts] * 2
        scratch = ([pltpu.VMEM((c, 1), jnp.float32) for c in couts] * 2
                   + [pltpu.VMEM((c_max, tn), jnp.float32)])

        s_flops = B * n_pad * sum(sum(dot_flops[:i + 1]) for i in range(n_layers))
        s_transc = B * n_pad * sum(sum(couts[:i]) for i in range(n_layers))
        s_bytes = (n_layers * int(x_p.size) * x_p.dtype.itemsize
                   + sum(int(a.size) * a.dtype.itemsize for a in inputs[1:]))

        stats_out = pl.pallas_call(
            stats_kernel,
            out_shape=out_shape,
            grid=(n_layers, B, n_tiles),
            in_specs=in_specs,
            out_specs=out_specs,
            scratch_shapes=scratch,
            # Shared BN accumulators across (b, t) -> sequential grid here.
            # TODO(synk): per-core partial sums (CORE_PARALLEL) for v7x megacore.
            compiler_params=_cparams(("arbitrary", "arbitrary", "arbitrary")),
            cost_estimate=pl.CostEstimate(flops=int(s_flops),
                                          transcendentals=int(s_transc),
                                          bytes_accessed=int(s_bytes)),
        )(*inputs)
        scales = list(stats_out[:n_layers])
        shifts = list(stats_out[n_layers:])
        # Fold the BN scale into the (tiny) weights; conv bias is exactly absorbed by BN.
        w_eff = [w * s for w, s in zip(weights, scales)]
        v_eff = shifts
    else:
        w_eff = weights
        v_eff = [lay["b"] for lay in params]

    # ------------- apply kernel: fully parallel, lane-dense output write ------------- #
    apply_kernel = _make_apply_kernel(n_layers, matmul_dtype)
    in_specs = [pl.BlockSpec((pl.Squeezed(), c0p, tn), lambda b, t: (b, 0, t))]
    inputs = [x_p]
    for w in w_eff:
        in_specs.append(_full2(w)); inputs.append(w)
    for v in v_eff:
        in_specs.append(_full2(v)); inputs.append(v)
    out_spec = pl.BlockSpec((pl.Squeezed(), couts[-1], tn), lambda b, t: (b, 0, t))

    a_flops = B * n_pad * sum(dot_flops)
    a_transc = B * n_pad * sum(couts)
    a_bytes = (int(x_p.size) * x_p.dtype.itemsize
               + B * n_pad * couts[-1] * jnp.dtype(out_dtype).itemsize
               + sum(int(a.size) * a.dtype.itemsize for a in inputs[1:]))

    out = pl.pallas_call(
        apply_kernel,
        out_shape=jax.ShapeDtypeStruct((B, couts[-1], n_pad), out_dtype),
        grid=(B, n_tiles),
        in_specs=in_specs,
        out_specs=out_spec,
        compiler_params=_cparams(("parallel", "parallel")),
        cost_estimate=pl.CostEstimate(flops=int(a_flops),
                                      transcendentals=int(a_transc),
                                      bytes_accessed=int(a_bytes)),
    )(*inputs)

    if n_pad != N:
        out = out[:, :, :N]
    return out


def mlpnet_forward(params, x, b_shared=True, if_bn=True,
                   matmul_dtype=jnp.float32, out_dtype=None):
    """[B, Cin, N] -> [B, Cout, N] (b_shared=True) or [B, Cin] -> [B, Cout]."""
    if b_shared:
        return _fused_mlp_ncw(params, x, if_bn=if_bn,
                              matmul_dtype=matmul_dtype, out_dtype=out_dtype)
    # Linear path: batch goes on the lane axis; BatchNorm1d over the batch is the same
    # reduction as BN over N with a single pseudo-batch.
    # TODO(synk): dropout (b_shared=False, dropout>0) not modeled; module default is 0.0.
    xt = jnp.transpose(x)[None, :, :]                       # [1, Cin, B]
    out = _fused_mlp_ncw(params, xt, if_bn=if_bn,
                         matmul_dtype=matmul_dtype, out_dtype=out_dtype)
    return jnp.transpose(out[0])                            # [B, Cout]


# --------------------------- parameter construction -------------------------- #

def init_mlpnet_params(key, nch_input, nch_layers, b_shared=True, if_bn=True):
    """Synthetic init matching mlp_layers(); b/gamma/beta stored pre-broadcast as [C,1]."""
    params = []
    last = nch_input
    for i, outp in enumerate(nch_layers):
        key, kw, kb = jax.random.split(key, 3)
        if b_shared:
            bound = (6.0 / last) ** 0.5 * (30.0 if i == 0 else 1.0)
            W = jax.random.uniform(kw, (outp, last), jnp.float32, -bound, bound)
        else:
            std = (2.0 / (last + outp)) ** 0.5
            W = std * jax.random.normal(kw, (outp, last), jnp.float32)
        bb = 1.0 / (last ** 0.5)
        bias = jax.random.uniform(kb, (outp, 1), jnp.float32, -bb, bb)
        layer = {"W": W, "b": bias}
        if if_bn:
            layer["gamma"] = jnp.ones((outp, 1), jnp.float32)
            layer["beta"] = jnp.zeros((outp, 1), jnp.float32)
        params.append(layer)
        last = outp
    return params


# ----------------------------- pure-JAX reference ---------------------------- #

def mlpnet_reference(params, x, if_bn=True, matmul_dtype=jnp.float32):
    """Plain JAX forward (with bias, centered-variance BN), no Pallas."""
    B, C0, N = x.shape
    a = jnp.transpose(x, (1, 0, 2)).reshape(C0, B * N).astype(jnp.float32)
    for lay in params:
        W = lay["W"]
        y = jnp.dot(W.astype(matmul_dtype), a.astype(matmul_dtype),
                    preferred_element_type=jnp.float32,
                    precision=jax.lax.Precision.HIGHEST) + lay["b"]
        if if_bn:
            mean = jnp.mean(y, axis=1, keepdims=True)
            var = jnp.mean(jnp.square(y - mean), axis=1, keepdims=True)
            y = (y - mean) * jax.lax.rsqrt(var + _BN_EPS) * lay["gamma"] + lay["beta"]
        a = jnp.sin(y)
    cout = a.shape[0]
    return jnp.transpose(a.reshape(cout, B, N), (1, 0, 2))


# ------------------------------------ main ------------------------------------ #

if __name__ == "__main__":
    key = jax.random.PRNGKey(0)
    k_param, k_x, k_x2 = jax.random.split(key, 3)

    B, Cin, N = 2, 4, 16
    nch_layers = (32, 32, 8)

    # Shared (Conv1d) path with BatchNorm + Sine.
    params = init_mlpnet_params(k_param, Cin, nch_layers, b_shared=True, if_bn=True)
    x = jax.random.normal(k_x, (B, Cin, N), dtype=jnp.float32)

    out = jax.block_until_ready(mlpnet_forward(params, x, b_shared=True, if_bn=True))
    assert out.shape == (B, nch_layers[-1], N), out.shape
    assert bool(jnp.all(jnp.isfinite(out)))
    ref = mlpnet_reference(params, x, if_bn=True)
    err = float(jnp.max(jnp.abs(out - ref)))
    assert err < 2e-2, f"BN path mismatch vs reference: {err}"

    # Shared path without BatchNorm.
    params_nb = init_mlpnet_params(k_param, Cin, nch_layers, b_shared=True, if_bn=False)
    out_nb = jax.block_until_ready(mlpnet_forward(params_nb, x, b_shared=True, if_bn=False))
    assert out_nb.shape == (B, nch_layers[-1], N)
    ref_nb = mlpnet_reference(params_nb, x, if_bn=False)
    err_nb = float(jnp.max(jnp.abs(out_nb - ref_nb)))
    assert err_nb < 2e-2, f"no-BN path mismatch vs reference: {err_nb}"

    # Linear (b_shared=False) path: [B, Cin] -> [B, Cout].
    Bl = 8
    xb = jax.random.normal(k_x2, (Bl, Cin), dtype=jnp.float32)
    params_lin = init_mlpnet_params(k_param, Cin, nch_layers, b_shared=False, if_bn=True)
    out_lin = jax.block_until_ready(
        mlpnet_forward(params_lin, xb, b_shared=False, if_bn=True))
    assert out_lin.shape == (Bl, nch_layers[-1]), out_lin.shape
    ref_lin = mlpnet_reference(params_lin, jnp.transpose(xb)[None], if_bn=True)[0].T
    err_lin = float(jnp.max(jnp.abs(out_lin - ref_lin)))
    assert err_lin < 2e-2, f"linear path mismatch vs reference: {err_lin}"

    print("KERNEL_OK")
</pallas_src>

<mosaic_0001>
module attributes {stable_mosaic.version = 11 : i64} {
  func.func @kernel(%arg0: i32, %arg1: i32, %arg2: i32, %arg3: memref<1x8x128xf32, #tpu.memory_space<vmem>>, %arg4: memref<32x8xf32, #tpu.memory_space<vmem>>, %arg5: memref<32x32xf32, #tpu.memory_space<vmem>>, %arg6: memref<8x32xf32, #tpu.memory_space<vmem>>, %arg7: memref<32x1xf32, #tpu.memory_space<vmem>>, %arg8: memref<32x1xf32, #tpu.memory_space<vmem>>, %arg9: memref<8x1xf32, #tpu.memory_space<vmem>>, %arg10: memref<32x1xf32, #tpu.memory_space<vmem>>, %arg11: memref<32x1xf32, #tpu.memory_space<vmem>>, %arg12: memref<8x1xf32, #tpu.memory_space<vmem>>, %arg13: memref<32x1xf32, #tpu.memory_space<vmem>>, %arg14: memref<32x1xf32, #tpu.memory_space<vmem>>, %arg15: memref<8x1xf32, #tpu.memory_space<vmem>>, %arg16: memref<32x1xf32, #tpu.memory_space<vmem>>, %arg17: memref<32x1xf32, #tpu.memory_space<vmem>>, %arg18: memref<8x1xf32, #tpu.memory_space<vmem>>, %arg19: memref<32x1xf32, #tpu.memory_space<vmem>>, %arg20: memref<32x1xf32, #tpu.memory_space<vmem>>, %arg21: memref<8x1xf32, #tpu.memory_space<vmem>>, %arg22: memref<32x1xf32, #tpu.memory_space<vmem>>, %arg23: memref<32x1xf32, #tpu.memory_space<vmem>>, %arg24: memref<8x1xf32, #tpu.memory_space<vmem>>, %arg25: memref<32x128xf32, #tpu.memory_space<vmem>>) attributes {dimension_semantics = [#tpu.dimension_semantics<arbitrary>, #tpu.dimension_semantics<arbitrary>, #tpu.dimension_semantics<arbitrary>], iteration_bounds = array<i64: 3, 2, 1>, scalar_prefetch = 0 : i64, scratch_operands = 7 : i64, tpu.core_type = #tpu.core_type<tc>, window_params = [{transform_indices = @transform_0, window_bounds = array<i64: 1, 8, 128>}, {pipeline_mode = #tpu.pipeline_mode<synchronous>, transform_indices = @transform_1, window_bounds = array<i64: 32, 8>}, {pipeline_mode = #tpu.pipeline_mode<synchronous>, transform_indices = @transform_2, window_bounds = array<i64: 32, 32>}, {pipeline_mode = #tpu.pipeline_mode<synchronous>, transform_indices = @transform_3, window_bounds = array<i64: 8, 32>}, {pipeline_mode = #tpu.pipeline_mode<synchronous>, transform_indices = @transform_4, window_bounds = array<i64: 32, 1>}, {pipeline_mode = #tpu.pipeline_mode<synchronous>, transform_indices = @transform_5, window_bounds = array<i64: 32, 1>}, {pipeline_mode = #tpu.pipeline_mode<synchronous>, transform_indices = @transform_6, window_bounds = array<i64: 8, 1>}, {pipeline_mode = #tpu.pipeline_mode<synchronous>, transform_indices = @transform_7, window_bounds = array<i64: 32, 1>}, {pipeline_mode = #tpu.pipeline_mode<synchronous>, transform_indices = @transform_8, window_bounds = array<i64: 32, 1>}, {pipeline_mode = #tpu.pipeline_mode<synchronous>, transform_indices = @transform_9, window_bounds = array<i64: 8, 1>}, {pipeline_mode = #tpu.pipeline_mode<synchronous>, transform_indices = @transform_10, window_bounds = array<i64: 32, 1>}, {pipeline_mode = #tpu.pipeline_mode<synchronous>, transform_indices = @transform_11, window_bounds = array<i64: 32, 1>}, {pipeline_mode = #tpu.pipeline_mode<synchronous>, transform_indices = @transform_12, window_bounds = array<i64: 8, 1>}, {pipeline_mode = #tpu.pipeline_mode<synchronous>, transform_indices = @transform_13, window_bounds = array<i64: 32, 1>}, {pipeline_mode = #tpu.pipeline_mode<synchronous>, transform_indices = @transform_14, window_bounds = array<i64: 32, 1>}, {pipeline_mode = #tpu.pipeline_mode<synchronous>, transform_indices = @transform_15, window_bounds = array<i64: 8, 1>}]} {
    %c0_i32 = arith.constant 0 : i32
    %0 = arith.cmpi eq, %arg0, %c0_i32 : i32
    %c0_i32_0 = arith.constant 0 : i32
    %1 = arith.cmpi eq, %arg1, %c0_i32_0 : i32
    %2 = arith.andi %0, %1 : i1
    %c0_i32_1 = arith.constant 0 : i32
    %3 = arith.cmpi eq, %arg2, %c0_i32_1 : i32
    %4 = arith.andi %2, %3 : i1
    %c1_i32 = arith.constant 1 : i32
    %5 = arith.cmpi eq, %arg1, %c1_i32 : i32
    %c0_i32_2 = arith.constant 0 : i32
    %6 = arith.cmpi eq, %arg2, %c0_i32_2 : i32
    %7 = arith.andi %5, %6 : i1
    %8 = arith.extui %4 : i1 to i32
    %c0_i32_3 = arith.constant 0 : i32
    %9 = arith.cmpi ne, %8, %c0_i32_3 : i32
    scf.if %9 {
      %cst_19 = arith.constant 0.000000e+00 : f32
      %36 = vector.broadcast %cst_19 : f32 to vector<32x1xf32>
      %c0_20 = arith.constant 0 : index
      %c0_21 = arith.constant 0 : index
      %37 = vector.load %arg19[%c0_20, %c0_21] : memref<32x1xf32, #tpu.memory_space<vmem>>, vector<32x1xf32>
      tpu.vector_store %arg19[%c0_20, %c0_21], %36 {strides = array<i32>} : memref<32x1xf32, #tpu.memory_space<vmem>>, vector<32x1xf32>,
      %cst_22 = arith.constant 0.000000e+00 : f32
      %38 = vector.broadcast %cst_22 : f32 to vector<32x1xf32>
      %c0_23 = arith.constant 0 : index
      %c0_24 = arith.constant 0 : index
      %39 = vector.load %arg22[%c0_23, %c0_24] : memref<32x1xf32, #tpu.memory_space<vmem>>, vector<32x1xf32>
      tpu.vector_store %arg22[%c0_23, %c0_24], %38 {strides = array<i32>} : memref<32x1xf32, #tpu.memory_space<vmem>>, vector<32x1xf32>,
      %cst_25 = arith.constant 0.000000e+00 : f32
      %40 = vector.broadcast %cst_25 : f32 to vector<32x1xf32>
      %c0_26 = arith.constant 0 : index
      %c0_27 = arith.constant 0 : index
      %41 = vector.load %arg20[%c0_26, %c0_27] : memref<32x1xf32, #tpu.memory_space<vmem>>, vector<32x1xf32>
      tpu.vector_store %arg20[%c0_26, %c0_27], %40 {strides = array<i32>} : memref<32x1xf32, #tpu.memory_space<vmem>>, vector<32x1xf32>,
      %cst_28 = arith.constant 0.000000e+00 : f32
      %42 = vector.broadcast %cst_28 : f32 to vector<32x1xf32>
      %c0_29 = arith.constant 0 : index
      %c0_30 = arith.constant 0 : index
      %43 = vector.load %arg23[%c0_29, %c0_30] : memref<32x1xf32, #tpu.memory_space<vmem>>, vector<32x1xf32>
      tpu.vector_store %arg23[%c0_29, %c0_30], %42 {strides = array<i32>} : memref<32x1xf32, #tpu.memory_space<vmem>>, vector<32x1xf32>,
      %cst_31 = arith.constant 0.000000e+00 : f32
      %44 = vector.broadcast %cst_31 : f32 to vector<8x1xf32>
      %c0_32 = arith.constant 0 : index
      %c0_33 = arith.constant 0 : index
      %45 = vector.load %arg21[%c0_32, %c0_33] : memref<8x1xf32, #tpu.memory_space<vmem>>, vector<8x1xf32>
      tpu.vector_store %arg21[%c0_32, %c0_33], %44 {strides = array<i32>} : memref<8x1xf32, #tpu.memory_space<vmem>>, vector<8x1xf32>,
      %cst_34 = arith.constant 0.000000e+00 : f32
      %46 = vector.broadcast %cst_34 : f32 to vector<8x1xf32>
      %c0_35 = arith.constant 0 : index
      %c0_36 = arith.constant 0 : index
      %47 = vector.load %arg24[%c0_35, %c0_36] : memref<8x1xf32, #tpu.memory_space<vmem>>, vector<8x1xf32>
      tpu.vector_store %arg24[%c0_35, %c0_36], %46 {strides = array<i32>} : memref<8x1xf32, #tpu.memory_space<vmem>>, vector<8x1xf32>,
    } else {
    }
    %10 = tpu.iota {dimensions = array<i32: 1>} : vector<1x128xi32>
    %c128_i32 = arith.constant 128 : i32
    %11 = arith.muli %arg2, %c128_i32 : i32
    %12 = vector.broadcast %11 : i32 to vector<1x128xi32>
    %13 = arith.addi %12, %10 : vector<1x128xi32>
    %c16_i32 = arith.constant 16 : i32
    %14 = vector.broadcast %c16_i32 : i32 to vector<1x128xi32>
    %15 = arith.cmpi slt, %13, %14 : vector<1x128xi32>
    %16 = arith.extui %15 : vector<1x128xi1> to vector<1x128xi32>
    %17 = arith.sitofp %16 : vector<1x128xi32> to vector<1x128xf32>
    %c0 = arith.constant 0 : index
    %c0_4 = arith.constant 0 : index
    %c0_5 = arith.constant 0 : index
    %18 = vector.load %arg3[%c0, %c0_4, %c0_5] : memref<1x8x128xf32, #tpu.memory_space<vmem>>, vector<1x8x128xf32>
    %19 = vector.shape_cast %18 : vector<1x8x128xf32> to vector<8x128xf32>
    %c0_6 = arith.constant 0 : index
    %c0_7 = arith.constant 0 : index
    %20 = vector.load %arg25[%c0_6, %c0_7] : memref<32x128xf32, #tpu.memory_space<vmem>>, vector<8x128xf32>
    tpu.vector_store %arg25[%c0_6, %c0_7], %19 {strides = array<i32>} : memref<32x128xf32, #tpu.memory_space<vmem>>, vector<8x128xf32>,
    %c0_8 = arith.constant 0 : index
    %c0_9 = arith.constant 0 : index
    %21 = vector.load %arg25[%c0_8, %c0_9] : memref<32x128xf32, #tpu.memory_space<vmem>>, vector<8x128xf32>
    %c0_10 = arith.constant 0 : index
    %c0_11 = arith.constant 0 : index
    %22 = vector.load %arg4[%c0_10, %c0_11] : memref<32x8xf32, #tpu.memory_space<vmem>>, vector<32x8xf32>
    %cst = arith.constant dense<0.000000e+00> : vector<32x128xf32>
    %23 = tpu.matmul %22, %21, %cst {dimension_numbers = #tpu.dot_dimension_numbers<[1], [0], [0], [1], [0, 0, 1, 1], [], []>} : vector<32x8xf32>, vector<8x128xf32>, vector<32x128xf32> -> vector<32x128xf32>
    %c0_i32_12 = arith.constant 0 : i32
    %24 = arith.cmpi eq, %arg0, %c0_i32_12 : i32
    %25 = arith.extui %24 : i1 to i32
    %c0_i32_13 = arith.constant 0 : i32
    %26 = arith.cmpi ne, %25, %c0_i32_13 : i32
    scf.if %26 {
      %36 = vector.broadcast %17 : vector<1x128xf32> to vector<32x128xf32>
      %37 = arith.mulf %23, %36 : vector<32x128xf32>
      %c0_19 = arith.constant 0 : index
      %c0_20 = arith.constant 0 : index
      %38 = vector.load %arg19[%c0_19, %c0_20] : memref<32x1xf32, #tpu.memory_space<vmem>>, vector<32x1xf32>
      %cst_21 = arith.constant dense<0.000000e+00> : vector<32xf32>
      %39 = vector.multi_reduction <add>, %37, %cst_21 [1] : vector<32x128xf32> to vector<32xf32>
      %40 = vector.shape_cast %39 : vector<32xf32> to vector<32x1xf32>
      %41 = arith.addf %38, %40 : vector<32x1xf32>
      %c0_22 = arith.constant 0 : index
      %c0_23 = arith.constant 0 : index
      %42 = vector.load %arg19[%c0_22, %c0_23] : memref<32x1xf32, #tpu.memory_space<vmem>>, vector<32x1xf32>
      tpu.vector_store %arg19[%c0_22, %c0_23], %41 {strides = array<i32>} : memref<32x1xf32, #tpu.memory_space<vmem>>, vector<32x1xf32>,
      %c0_24 = arith.constant 0 : index
      %c0_25 = arith.constant 0 : index
      %43 = vector.load %arg22[%c0_24, %c0_25] : memref<32x1xf32, #tpu.memory_space<vmem>>, vector<32x1xf32>
      %44 = arith.mulf %37, %37 : vector<32x128xf32>
      %cst_26 = arith.constant dense<0.000000e+00> : vector<32xf32>
      %45 = vector.multi_reduction <add>, %44, %cst_26 [1] : vector<32x128xf32> to vector<32xf32>
      %46 = vector.shape_cast %45 : vector<32xf32> to vector<32x1xf32>
      %47 = arith.addf %43, %46 : vector<32x1xf32>
      %c0_27 = arith.constant 0 : index
      %c0_28 = arith.constant 0 : index
      %48 = vector.load %arg22[%c0_27, %c0_28] : memref<32x1xf32, #tpu.memory_space<vmem>>, vector<32x1xf32>
      tpu.vector_store %arg22[%c0_27, %c0_28], %47 {strides = array<i32>} : memref<32x1xf32, #tpu.memory_space<vmem>>, vector<32x1xf32>,
      %49 = arith.extui %7 : i1 to i32
      %c0_i32_29 = arith.constant 0 : i32
      %50 = arith.cmpi ne, %49, %c0_i32_29 : i32
      scf.if %50 {
        %c0_30 = arith.constant 0 : index
        %c0_31 = arith.constant 0 : index
        %51 = vector.load %arg19[%c0_30, %c0_31] : memref<32x1xf32, #tpu.memory_space<vmem>>, vector<32x1xf32>
        %cst_32 = arith.constant 3.125000e-02 : f32
        %52 = vector.broadcast %cst_32 : f32 to vector<32x1xf32>
        %53 = arith.mulf %51, %52 : vector<32x1xf32>
        %c0_33 = arith.constant 0 : index
        %c0_34 = arith.constant 0 : index
        %54 = vector.load %arg22[%c0_33, %c0_34] : memref<32x1xf32, #tpu.memory_space<vmem>>, vector<32x1xf32>
        %cst_35 = arith.constant 3.125000e-02 : f32
        %55 = vector.broadcast %cst_35 : f32 to vector<32x1xf32>
        %56 = arith.mulf %54, %55 : vector<32x1xf32>
        %57 = arith.mulf %53, %53 : vector<32x1xf32>
        %58 = arith.subf %56, %57 : vector<32x1xf32>
        %cst_36 = arith.constant 0.000000e+00 : f32
        %59 = vector.broadcast %cst_36 : f32 to vector<32x1xf32>
        %60 = arith.maximumf %58, %59 : vector<32x1xf32>
        %c0_37 = arith.constant 0 : index
        %c0_38 = arith.constant 0 : index
        %61 = vector.load %arg7[%c0_37, %c0_38] : memref<32x1xf32, #tpu.memory_space<vmem>>, vector<32x1xf32>
        %cst_39 = arith.constant 9.99999974E-6 : f32
        %62 = vector.broadcast %cst_39 : f32 to vector<32x1xf32>
        %63 = arith.addf %60, %62 : vector<32x1xf32>
        %64 = math.rsqrt %63 : vector<32x1xf32>
        %65 = arith.mulf %61, %64 : vector<32x1xf32>
        %c0_40 = arith.constant 0 : index
        %c0_41 = arith.constant 0 : index
        %66 = vector.load %arg13[%c0_40, %c0_41] : memref<32x1xf32, #tpu.memory_space<vmem>>, vector<32x1xf32>
        tpu.vector_store %arg13[%c0_40, %c0_41], %65 {strides = array<i32>} : memref<32x1xf32, #tpu.memory_space<vmem>>, vector<32x1xf32>,
        %c0_42 = arith.constant 0 : index
        %c0_43 = arith.constant 0 : index
        %67 = vector.load %arg10[%c0_42, %c0_43] : memref<32x1xf32, #tpu.memory_space<vmem>>, vector<32x1xf32>
        %68 = arith.mulf %53, %65 : vector<32x1xf32>
        %69 = arith.subf %67, %68 : vector<32x1xf32>
        %c0_44 = arith.constant 0 : index
        %c0_45 = arith.constant 0 : index
        %70 = vector.load %arg16[%c0_44, %c0_45] : memref<32x1xf32, #tpu.memory_space<vmem>>, vector<32x1xf32>
        tpu.vector_store %arg16[%c0_44, %c0_45], %69 {strides = array<i32>} : memref<32x1xf32, #tpu.memory_space<vmem>>, vector<32x1xf32>,
      } else {
      }
    } else {
    }
    %c0_i32_14 = arith.constant 0 : i32
    %27 = arith.cmpi sgt, %arg0, %c0_i32_14 : i32
    %28 = arith.extui %27 : i1 to i32
    %c0_i32_15 = arith.constant 0 : i32
    %29 = arith.cmpi ne, %28, %c0_i32_15 : i32
    scf.if %29 {
      %c0_19 = arith.constant 0 : index
      %c0_20 = arith.constant 0 : index
      %36 = vector.load %arg13[%c0_19, %c0_20] : memref<32x1xf32, #tpu.memory_space<vmem>>, vector<32x1xf32>
      %37 = vector.broadcast %36 : vector<32x1xf32> to vector<32x128xf32>
      %38 = arith.mulf %23, %37 : vector<32x128xf32>
      %c0_21 = arith.constant 0 : index
      %c0_22 = arith.constant 0 : index
      %39 = vector.load %arg16[%c0_21, %c0_22] : memref<32x1xf32, #tpu.memory_space<vmem>>, vector<32x1xf32>
      %40 = vector.broadcast %39 : vector<32x1xf32> to vector<32x128xf32>
      %41 = arith.addf %38, %40 : vector<32x128xf32>
      %42 = math.sin %41 : vector<32x128xf32>
      %c0_23 = arith.constant 0 : index
      %c0_24 = arith.constant 0 : index
      %43 = vector.load %arg25[%c0_23, %c0_24] : memref<32x128xf32, #tpu.memory_space<vmem>>, vector<32x128xf32>
      tpu.vector_store %arg25[%c0_23, %c0_24], %42 {strides = array<i32>} : memref<32x128xf32, #tpu.memory_space<vmem>>, vector<32x128xf32>,
    } else {
    }
    %c1_i32_16 = arith.constant 1 : i32
    %30 = arith.cmpi sge, %arg0, %c1_i32_16 : i32
    %31 = arith.extui %30 : i1 to i32
    %c0_i32_17 = arith.constant 0 : i32
    %32 = arith.cmpi ne, %31, %c0_i32_17 : i32
    scf.if %32 {
      %c0_19 = arith.constant 0 : index
      %c0_20 = arith.constant 0 : index
      %36 = vector.load %arg25[%c0_19, %c0_20] : memref<32x128xf32, #tpu.memory_space<vmem>>, vector<32x128xf32>
      %c0_21 = arith.constant 0 : index
      %c0_22 = arith.constant 0 : index
      %37 = vector.load %arg5[%c0_21, %c0_22] : memref<32x32xf32, #tpu.memory_space<vmem>>, vector<32x32xf32>
      %cst_23 = arith.constant dense<0.000000e+00> : vector<32x128xf32>
      %38 = tpu.matmul %37, %36, %cst_23 {dimension_numbers = #tpu.dot_dimension_numbers<[1], [0], [0], [1], [0, 0, 1, 1], [], []>} : vector<32x32xf32>, vector<32x128xf32>, vector<32x128xf32> -> vector<32x128xf32>
      %c1_i32_24 = arith.constant 1 : i32
      %39 = arith.cmpi eq, %arg0, %c1_i32_24 : i32
      %40 = arith.extui %39 : i1 to i32
      %c0_i32_25 = arith.constant 0 : i32
      %41 = arith.cmpi ne, %40, %c0_i32_25 : i32
      scf.if %41 {
        %45 = vector.broadcast %17 : vector<1x128xf32> to vector<32x128xf32>
        %46 = arith.mulf %38, %45 : vector<32x128xf32>
        %c0_28 = arith.constant 0 : index
        %c0_29 = arith.constant 0 : index
        %47 = vector.load %arg20[%c0_28, %c0_29] : memref<32x1xf32, #tpu.memory_space<vmem>>, vector<32x1xf32>
        %cst_30 = arith.constant dense<0.000000e+00> : vector<32xf32>
        %48 = vector.multi_reduction <add>, %46, %cst_30 [1] : vector<32x128xf32> to vector<32xf32>
        %49 = vector.shape_cast %48 : vector<32xf32> to vector<32x1xf32>
        %50 = arith.addf %47, %49 : vector<32x1xf32>
        %c0_31 = arith.constant 0 : index
        %c0_32 = arith.constant 0 : index
        %51 = vector.load %arg20[%c0_31, %c0_32] : memref<32x1xf32, #tpu.memory_space<vmem>>, vector<32x1xf32>
        tpu.vector_store %arg20[%c0_31, %c0_32], %50 {strides = array<i32>} : memref<32x1xf32, #tpu.memory_space<vmem>>, vector<32x1xf32>,
        %c0_33 = arith.constant 0 : index
        %c0_34 = arith.constant 0 : index
        %52 = vector.load %arg23[%c0_33, %c0_34] : memref<32x1xf32, #tpu.memory_space<vmem>>, vector<32x1xf32>
        %53 = arith.mulf %46, %46 : vector<32x128xf32>
        %cst_35 = arith.constant dense<0.000000e+00> : vector<32xf32>
        %54 = vector.multi_reduction <add>, %53, %cst_35 [1] : vector<32x128xf32> to vector<32xf32>
        %55 = vector.shape_cast %54 : vector<32xf32> to vector<32x1xf32>
        %56 = arith.addf %52, %55 : vector<32x1xf32>
        %c0_36 = arith.constant 0 : index
        %c0_37 = arith.constant 0 : index
        %57 = vector.load %arg23[%c0_36, %c0_37] : memref<32x1xf32, #tpu.memory_space<vmem>>, vector<32x1xf32>
        tpu.vector_store %arg23[%c0_36, %c0_37], %56 {strides = array<i32>} : memref<32x1xf32, #tpu.memory_space<vmem>>, vector<32x1xf32>,
        %58 = arith.extui %7 : i1 to i32
        %c0_i32_38 = arith.constant 0 : i32
        %59 = arith.cmpi ne, %58, %c0_i32_38 : i32
        scf.if %59 {
          %c0_39 = arith.constant 0 : index
          %c0_40 = arith.constant 0 : index
          %60 = vector.load %arg20[%c0_39, %c0_40] : memref<32x1xf32, #tpu.memory_space<vmem>>, vector<32x1xf32>
          %cst_41 = arith.constant 3.125000e-02 : f32
          %61 = vector.broadcast %cst_41 : f32 to vector<32x1xf32>
          %62 = arith.mulf %60, %61 : vector<32x1xf32>
          %c0_42 = arith.constant 0 : index
          %c0_43 = arith.constant 0 : index
          %63 = vector.load %arg23[%c0_42, %c0_43] : memref<32x1xf32, #tpu.memory_space<vmem>>, vector<32x1xf32>
          %cst_44 = arith.constant 3.125000e-02 : f32
          %64 = vector.broadcast %cst_44 : f32 to vector<32x1xf32>
          %65 = arith.mulf %63, %64 : vector<32x1xf32>
          %66 = arith.mulf %62, %62 : vector<32x1xf32>
          %67 = arith.subf %65, %66 : vector<32x1xf32>
          %cst_45 = arith.constant 0.000000e+00 : f32
          %68 = vector.broadcast %cst_45 : f32 to vector<32x1xf32>
          %69 = arith.maximumf %67, %68 : vector<32x1xf32>
          %c0_46 = arith.constant 0 : index
          %c0_47 = arith.constant 0 : index
          %70 = vector.load %arg8[%c0_46, %c0_47] : memref<32x1xf32, #tpu.memory_space<vmem>>, vector<32x1xf32>
          %cst_48 = arith.constant 9.99999974E-6 : f32
          %71 = vector.broadcast %cst_48 : f32 to vector<32x1xf32>
          %72 = arith.addf %69, %71 : vector<32x1xf32>
          %73 = math.rsqrt %72 : vector<32x1xf32>
          %74 = arith.mulf %70, %73 : vector<32x1xf32>
          %c0_49 = arith.constant 0 : index
          %c0_50 = arith.constant 0 : index
          %75 = vector.load %arg14[%c0_49, %c0_50] : memref<32x1xf32, #tpu.memory_space<vmem>>, vector<32x1xf32>
          tpu.vector_store %arg14[%c0_49, %c0_50], %74 {strides = array<i32>} : memref<32x1xf32, #tpu.memory_space<vmem>>, vector<32x1xf32>,
          %c0_51 = arith.constant 0 : index
          %c0_52 = arith.constant 0 : index
          %76 = vector.load %arg11[%c0_51, %c0_52] : memref<32x1xf32, #tpu.memory_space<vmem>>, vector<32x1xf32>
          %77 = arith.mulf %62, %74 : vector<32x1xf32>
          %78 = arith.subf %76, %77 : vector<32x1xf32>
          %c0_53 = arith.constant 0 : index
          %c0_54 = arith.constant 0 : index
          %79 = vector.load %arg17[%c0_53, %c0_54] : memref<32x1xf32, #tpu.memory_space<vmem>>, vector<32x1xf32>
          tpu.vector_store %arg17[%c0_53, %c0_54], %78 {strides = array<i32>} : memref<32x1xf32, #tpu.memory_space<vmem>>, vector<32x1xf32>,
        } else {
        }
      } else {
      }
      %c1_i32_26 = arith.constant 1 : i32
      %42 = arith.cmpi sgt, %arg0, %c1_i32_26 : i32
      %43 = arith.extui %42 : i1 to i32
      %c0_i32_27 = arith.constant 0 : i32
      %44 = arith.cmpi ne, %43, %c0_i32_27 : i32
      scf.if %44 {
        %c0_28 = arith.constant 0 : index
        %c0_29 = arith.constant 0 : index
        %45 = vector.load %arg14[%c0_28, %c0_29] : memref<32x1xf32, #tpu.memory_space<vmem>>, vector<32x1xf32>
        %46 = vector.broadcast %45 : vector<32x1xf32> to vector<32x128xf32>
        %47 = arith.mulf %38, %46 : vector<32x128xf32>
        %c0_30 = arith.constant 0 : index
        %c0_31 = arith.constant 0 : index
        %48 = vector.load %arg17[%c0_30, %c0_31] : memref<32x1xf32, #tpu.memory_space<vmem>>, vector<32x1xf32>
        %49 = vector.broadcast %48 : vector<32x1xf32> to vector<32x128xf32>
        %50 = arith.addf %47, %49 : vector<32x128xf32>
        %51 = math.sin %50 : vector<32x128xf32>
        %c0_32 = arith.constant 0 : index
        %c0_33 = arith.constant 0 : index
        %52 = vector.load %arg25[%c0_32, %c0_33] : memref<32x128xf32, #tpu.memory_space<vmem>>, vector<32x128xf32>
        tpu.vector_store %arg25[%c0_32, %c0_33], %51 {strides = array<i32>} : memref<32x128xf32, #tpu.memory_space<vmem>>, vector<32x128xf32>,
      } else {
      }
    } else {
    }
    %c2_i32 = arith.constant 2 : i32
    %33 = arith.cmpi sge, %arg0, %c2_i32 : i32
    %34 = arith.extui %33 : i1 to i32
    %c0_i32_18 = arith.constant 0 : i32
    %35 = arith.cmpi ne, %34, %c0_i32_18 : i32
    scf.if %35 {
      %c0_19 = arith.constant 0 : index
      %c0_20 = arith.constant 0 : index
      %36 = vector.load %arg25[%c0_19, %c0_20] : memref<32x128xf32, #tpu.memory_space<vmem>>, vector<32x128xf32>
      %c0_21 = arith.constant 0 : index
      %c0_22 = arith.constant 0 : index
      %37 = vector.load %arg6[%c0_21, %c0_22] : memref<8x32xf32, #tpu.memory_space<vmem>>, vector<8x32xf32>
      %cst_23 = arith.constant dense<0.000000e+00> : vector<8x128xf32>
      %38 = tpu.matmul %37, %36, %cst_23 {dimension_numbers = #tpu.dot_dimension_numbers<[1], [0], [0], [1], [0, 0, 1, 1], [], []>} : vector<8x32xf32>, vector<32x128xf32>, vector<8x128xf32> -> vector<8x128xf32>
      %c2_i32_24 = arith.constant 2 : i32
      %39 = arith.cmpi eq, %arg0, %c2_i32_24 : i32
      %40 = arith.extui %39 : i1 to i32
      %c0_i32_25 = arith.constant 0 : i32
      %41 = arith.cmpi ne, %40, %c0_i32_25 : i32
      scf.if %41 {
        %42 = vector.broadcast %17 : vector<1x128xf32> to vector<8x128xf32>
        %43 = arith.mulf %38, %42 : vector<8x128xf32>
        %c0_26 = arith.constant 0 : index
        %c0_27 = arith.constant 0 : index
        %44 = vector.load %arg21[%c0_26, %c0_27] : memref<8x1xf32, #tpu.memory_space<vmem>>, vector<8x1xf32>
        %cst_28 = arith.constant dense<0.000000e+00> : vector<8xf32>
        %45 = vector.multi_reduction <add>, %43, %cst_28 [1] : vector<8x128xf32> to vector<8xf32>
        %46 = vector.shape_cast %45 : vector<8xf32> to vector<8x1xf32>
        %47 = arith.addf %44, %46 : vector<8x1xf32>
        %c0_29 = arith.constant 0 : index
        %c0_30 = arith.constant 0 : index
        %48 = vector.load %arg21[%c0_29, %c0_30] : memref<8x1xf32, #tpu.memory_space<vmem>>, vector<8x1xf32>
        tpu.vector_store %arg21[%c0_29, %c0_30], %47 {strides = array<i32>} : memref<8x1xf32, #tpu.memory_space<vmem>>, vector<8x1xf32>,
        %c0_31 = arith.constant 0 : index
        %c0_32 = arith.constant 0 : index
        %49 = vector.load %arg24[%c0_31, %c0_32] : memref<8x1xf32, #tpu.memory_space<vmem>>, vector<8x1xf32>
        %50 = arith.mulf %43, %43 : vector<8x128xf32>
        %cst_33 = arith.constant dense<0.000000e+00> : vector<8xf32>
        %51 = vector.multi_reduction <add>, %50, %cst_33 [1] : vector<8x128xf32> to vector<8xf32>
        %52 = vector.shape_cast %51 : vector<8xf32> to vector<8x1xf32>
        %53 = arith.addf %49, %52 : vector<8x1xf32>
        %c0_34 = arith.constant 0 : index
        %c0_35 = arith.constant 0 : index
        %54 = vector.load %arg24[%c0_34, %c0_35] : memref<8x1xf32, #tpu.memory_space<vmem>>, vector<8x1xf32>
        tpu.vector_store %arg24[%c0_34, %c0_35], %53 {strides = array<i32>} : memref<8x1xf32, #tpu.memory_space<vmem>>, vector<8x1xf32>,
        %55 = arith.extui %7 : i1 to i32
        %c0_i32_36 = arith.constant 0 : i32
        %56 = arith.cmpi ne, %55, %c0_i32_36 : i32
        scf.if %56 {
          %c0_37 = arith.constant 0 : index
          %c0_38 = arith.constant 0 : index
          %57 = vector.load %arg21[%c0_37, %c0_38] : memref<8x1xf32, #tpu.memory_space<vmem>>, vector<8x1xf32>
          %cst_39 = arith.constant 3.125000e-02 : f32
          %58 = vector.broadcast %cst_39 : f32 to vector<8x1xf32>
          %59 = arith.mulf %57, %58 : vector<8x1xf32>
          %c0_40 = arith.constant 0 : index
          %c0_41 = arith.constant 0 : index
          %60 = vector.load %arg24[%c0_40, %c0_41] : memref<8x1xf32, #tpu.memory_space<vmem>>, vector<8x1xf32>
          %cst_42 = arith.constant 3.125000e-02 : f32
          %61 = vector.broadcast %cst_42 : f32 to vector<8x1xf32>
          %62 = arith.mulf %60, %61 : vector<8x1xf32>
          %63 = arith.mulf %59, %59 : vector<8x1xf32>
          %64 = arith.subf %62, %63 : vector<8x1xf32>
          %cst_43 = arith.constant 0.000000e+00 : f32
          %65 = vector.broadcast %cst_43 : f32 to vector<8x1xf32>
          %66 = arith.maximumf %64, %65 : vector<8x1xf32>
          %c0_44 = arith.constant 0 : index
          %c0_45 = arith.constant 0 : index
          %67 = vector.load %arg9[%c0_44, %c0_45] : memref<8x1xf32, #tpu.memory_space<vmem>>, vector<8x1xf32>
          %cst_46 = arith.constant 9.99999974E-6 : f32
          %68 = vector.broadcast %cst_46 : f32 to vector<8x1xf32>
          %69 = arith.addf %66, %68 : vector<8x1xf32>
          %70 = math.rsqrt %69 : vector<8x1xf32>
          %71 = arith.mulf %67, %70 : vector<8x1xf32>
          %c0_47 = arith.constant 0 : index
          %c0_48 = arith.constant 0 : index
          %72 = vector.load %arg15[%c0_47, %c0_48] : memref<8x1xf32, #tpu.memory_space<vmem>>, vector<8x1xf32>
          tpu.vector_store %arg15[%c0_47, %c0_48], %71 {strides = array<i32>} : memref<8x1xf32, #tpu.memory_space<vmem>>, vector<8x1xf32>,
          %c0_49 = arith.constant 0 : index
          %c0_50 = arith.constant 0 : index
          %73 = vector.load %arg12[%c0_49, %c0_50] : memref<8x1xf32, #tpu.memory_space<vmem>>, vector<8x1xf32>
          %74 = arith.mulf %59, %71 : vector<8x1xf32>
          %75 = arith.subf %73, %74 : vector<8x1xf32>
          %c0_51 = arith.constant 0 : index
          %c0_52 = arith.constant 0 : index
          %76 = vector.load %arg18[%c0_51, %c0_52] : memref<8x1xf32, #tpu.memory_space<vmem>>, vector<8x1xf32>
          tpu.vector_store %arg18[%c0_51, %c0_52], %75 {strides = array<i32>} : memref<8x1xf32, #tpu.memory_space<vmem>>, vector<8x1xf32>,
        } else {
        }
      } else {
      }
    } else {
    }
    return
  }
  func.func @transform_0(%arg0: i32, %arg1: i32, %arg2: i32) -> (i32, i32, i32) {
    %c0_i32 = arith.constant 0 : i32
    %c0_i32_0 = arith.constant 0 : i32
    return %arg1, %c0_i32, %arg2 : i32, i32, i32
  }
  func.func @transform_1(%arg0: i32, %arg1: i32, %arg2: i32) -> (i32, i32) {
    %c0_i32 = arith.constant 0 : i32
    %c0_i32_0 = arith.constant 0 : i32
    %c0_i32_1 = arith.constant 0 : i32
    return %c0_i32, %c0_i32_0 : i32, i32
  }
  func.func @transform_2(%arg0: i32, %arg1: i32, %arg2: i32) -> (i32, i32) {
    %c0_i32 = arith.constant 0 : i32
    %c0_i32_0 = arith.constant 0 : i32
    %c0_i32_1 = arith.constant 0 : i32
    return %c0_i32, %c0_i32_0 : i32, i32
  }
  func.func @transform_3(%arg0: i32, %arg1: i32, %arg2: i32) -> (i32, i32) {
    %c0_i32 = arith.constant 0 : i32
    %c0_i32_0 = arith.constant 0 : i32
    %c0_i32_1 = arith.constant 0 : i32
    return %c0_i32, %c0_i32_0 : i32, i32
  }
  func.func @transform_4(%arg0: i32, %arg1: i32, %arg2: i32) -> (i32, i32) {
    %c0_i32 = arith.constant 0 : i32
    %c0_i32_0 = arith.constant 0 : i32
    %c0_i32_1 = arith.constant 0 : i32
    return %c0_i32, %c0_i32_0 : i32, i32
  }
  func.func @transform_5(%arg0: i32, %arg1: i32, %arg2: i32) -> (i32, i32) {
    %c0_i32 = arith.constant 0 : i32
    %c0_i32_0 = arith.constant 0 : i32
    %c0_i32_1 = arith.constant 0 : i32
    return %c0_i32, %c0_i32_0 : i32, i32
  }
  func.func @transform_6(%arg0: i32, %arg1: i32, %arg2: i32) -> (i32, i32) {
    %c0_i32 = arith.constant 0 : i32
    %c0_i32_0 = arith.constant 0 : i32
    %c0_i32_1 = arith.constant 0 : i32
    return %c0_i32, %c0_i32_0 : i32, i32
  }
  func.func @transform_7(%arg0: i32, %arg1: i32, %arg2: i32) -> (i32, i32) {
    %c0_i32 = arith.constant 0 : i32
    %c0_i32_0 = arith.constant 0 : i32
    %c0_i32_1 = arith.constant 0 : i32
    return %c0_i32, %c0_i32_0 : i32, i32
  }
  func.func @transform_8(%arg0: i32, %arg1: i32, %arg2: i32) -> (i32, i32) {
    %c0_i32 = arith.constant 0 : i32
    %c0_i32_0 = arith.constant 0 : i32
    %c0_i32_1 = arith.constant 0 : i32
    return %c0_i32, %c0_i32_0 : i32, i32
  }
  func.func @transform_9(%arg0: i32, %arg1: i32, %arg2: i32) -> (i32, i32) {
    %c0_i32 = arith.constant 0 : i32
    %c0_i32_0 = arith.constant 0 : i32
    %c0_i32_1 = arith.constant 0 : i32
    return %c0_i32, %c0_i32_0 : i32, i32
  }
  func.func @transform_10(%arg0: i32, %arg1: i32, %arg2: i32) -> (i32, i32) {
    %c0_i32 = arith.constant 0 : i32
    %c0_i32_0 = arith.constant 0 : i32
    %c0_i32_1 = arith.constant 0 : i32
    return %c0_i32, %c0_i32_0 : i32, i32
  }
  func.func @transform_11(%arg0: i32, %arg1: i32, %arg2: i32) -> (i32, i32) {
    %c0_i32 = arith.constant 0 : i32
    %c0_i32_0 = arith.constant 0 : i32
    %c0_i32_1 = arith.constant 0 : i32
    return %c0_i32, %c0_i32_0 : i32, i32
  }
  func.func @transform_12(%arg0: i32, %arg1: i32, %arg2: i32) -> (i32, i32) {
    %c0_i32 = arith.constant 0 : i32
    %c0_i32_0 = arith.constant 0 : i32
    %c0_i32_1 = arith.constant 0 : i32
    return %c0_i32, %c0_i32_0 : i32, i32
  }
  func.func @transform_13(%arg0: i32, %arg1: i32, %arg2: i32) -> (i32, i32) {
    %c0_i32 = arith.constant 0 : i32
    %c0_i32_0 = arith.constant 0 : i32
    %c0_i32_1 = arith.constant 0 : i32
    return %c0_i32, %c0_i32_0 : i32, i32
  }
  func.func @transform_14(%arg0: i32, %arg1: i32, %arg2: i32) -> (i32, i32) {
    %c0_i32 = arith.constant 0 : i32
    %c0_i32_0 = arith.constant 0 : i32
    %c0_i32_1 = arith.constant 0 : i32
    return %c0_i32, %c0_i32_0 : i32, i32
  }
  func.func @transform_15(%arg0: i32, %arg1: i32, %arg2: i32) -> (i32, i32) {
    %c0_i32 = arith.constant 0 : i32
    %c0_i32_0 = arith.constant 0 : i32
    %c0_i32_1 = arith.constant 0 : i32
    return %c0_i32, %c0_i32_0 : i32, i32
  }
}

</mosaic_0001>

<llo_original>
// kernel: tpu_custom_call.1
$region0: #{tpu_custom_call.1}
  #allocation0 [shape = 'u32[]', space=smem, size = 0x4, offset = 0x4, fixed_abs, tag = 'smem constant byte address 0x4 - core index']
  #allocation1 [shape = 'u32[144,128]{1,0:T(1,128)}', space=vmem, size = 0x12000, scoped, tag = 'internal scratch']
  #allocation2 [shape = 'f32[32,1]{1,0:T(8,128)}', space=vmem, size = 0x4000, scoped, tag = 'scratch operand']
  #allocation3 [shape = 'f32[32,1]{1,0:T(8,128)}', space=vmem, size = 0x4000, scoped, tag = 'scratch operand']
  #allocation4 [shape = 'f32[8,1]{1,0:T(8,128)}', space=vmem, size = 0x1000, scoped, tag = 'scratch operand']
  #allocation5 [shape = 'f32[32,1]{1,0:T(8,128)}', space=vmem, size = 0x4000, scoped, tag = 'scratch operand']
  #allocation6 [shape = 'f32[32,1]{1,0:T(8,128)}', space=vmem, size = 0x4000, scoped, tag = 'scratch operand']
  #allocation7 [shape = 'f32[8,1]{1,0:T(8,128)}', space=vmem, size = 0x1000, scoped, tag = 'scratch operand']
  #allocation8 [shape = 'f32[32,128]{1,0:T(8,128)}', space=vmem, size = 0x4000, scoped, tag = 'scratch operand']
  %s0 = inlined_call_operand.vmem [shape: f32[2,8,128], index: 0, kind: input, shape index: {}]
  %s1 = inlined_call_operand.vmem [shape: f32[32,8], index: 1, kind: input, shape index: {}]
  %s2 = inlined_call_operand.vmem [shape: f32[32,32], index: 2, kind: input, shape index: {}]
  %s3 = inlined_call_operand.vmem [shape: f32[8,32], index: 3, kind: input, shape index: {}]
  %s4 = inlined_call_operand.vmem [shape: f32[32,1], index: 4, kind: input, shape index: {}]
  %s5 = inlined_call_operand.vmem [shape: f32[32,1], index: 5, kind: input, shape index: {}]
  %s6 = inlined_call_operand.vmem [shape: f32[8,1], index: 6, kind: input, shape index: {}]
  %s7 = inlined_call_operand.vmem [shape: f32[32,1], index: 7, kind: input, shape index: {}]
  %s8 = inlined_call_operand.vmem [shape: f32[32,1], index: 8, kind: input, shape index: {}]
  %s9 = inlined_call_operand.vmem [shape: f32[8,1], index: 9, kind: input, shape index: {}]
  %s10 = inlined_call_operand.vmem [shape: f32[32,1], index: 10, kind: output, shape index: {0}]
  %s11 = inlined_call_operand.vmem [shape: f32[32,1], index: 11, kind: output, shape index: {1}]
  %s12 = inlined_call_operand.vmem [shape: f32[8,1], index: 12, kind: output, shape index: {2}]
  %s13 = inlined_call_operand.vmem [shape: f32[32,1], index: 13, kind: output, shape index: {3}]
  %s14 = inlined_call_operand.vmem [shape: f32[32,1], index: 14, kind: output, shape index: {4}]
  %s15 = inlined_call_operand.vmem [shape: f32[8,1], index: 15, kind: output, shape index: {5}]
  %16 = xla_tuple %s10, %s11, %s12, %s13, %s14, %s15
  %s17 = sld [smem:[#allocation0]]
  $region157: #{tpu_custom_call.1} parent=0
    _
  %s19 = ssub.s32 1, %s17
  %s20 = scalar_select 0, %s19, %s17
  loop: start=0, step=1, limit=8
  $region2: #{tpu_custom_call.1} parent=0 // loop_pre_header
    _
  $region3: #{tpu_custom_call.1} parent=0 // loop_header
    %s22 = sphi 0, %s26
    %p23 = scmp.ge.s32.totalorder %s22, 8
    %s29 = sphi 0, %s48
    %s30 = sphi 0, %s44
    %s31 = sphi 0, %s40
    %s32 = sphi 0, %s29
    %s33 = sphi 0, %s30
    %s34 = sphi 0, %s31
    %s35 = sphi 0, %s32
    %s36 = sphi 0, %s33
    %s37 = sphi 0, %s34
    %s53 = sphi 0, %s55
    %s56 = sphi 0, %s53
    %s57 = sphi 0, %s56
    %s73 = sphi 0, %s57
    %s77 = sphi 0, %s77
    %s79 = sphi 0, %s77
    %s80 = sphi 0, %s79
    %s94 = sphi 0, %s80
    %s98 = sphi 0, %s98
    %s100 = sphi 0, %s98
    %s101 = sphi 0, %s100
    %s115 = sphi 0, %s101
    %s119 = sphi 0, %s119
    %s121 = sphi 0, %s119
    %s122 = sphi 0, %s121
    %s136 = sphi 0, %s122
    %s140 = sphi 0, %s140
    %s142 = sphi 0, %s140
    %s143 = sphi 0, %s142
    %s157 = sphi 0, %s143
    %s161 = sphi 0, %s161
    %s163 = sphi 0, %s161
    %s164 = sphi 0, %s163
    %s178 = sphi 0, %s164
    %s182 = sphi 0, %s182
    %s184 = sphi 0, %s182
    %s185 = sphi 0, %s184
    %s199 = sphi 0, %s185
    %s203 = sphi 0, %s203
    %s205 = sphi 0, %s203
    %s206 = sphi 0, %s205
    %s220 = sphi 0, %s206
    %s224 = sphi 0, %s224
    %s226 = sphi 0, %s224
    %s227 = sphi 0, %s226
    %s241 = sphi 0, %s227
    %s245 = sphi 0, %s245
    %s247 = sphi 0, %s245
    %s248 = sphi 0, %s247
    %s262 = sphi 0, %s248
    %s266 = sphi 0, %s266
    %s268 = sphi 0, %s266
    %s269 = sphi 0, %s268
    %s283 = sphi 0, %s269
    %s287 = sphi 0, %s287
    %s289 = sphi 0, %s287
    %s290 = sphi 0, %s289
    %s304 = sphi 0, %s290
    %s308 = sphi 0, %s308
    %s310 = sphi 0, %s308
    %s311 = sphi 0, %s310
    %s325 = sphi 0, %s311
    %s329 = sphi 0, %s329
    %s331 = sphi 0, %s329
    %s332 = sphi 0, %s331
    %s346 = sphi 0, %s332
    %s350 = sphi 0, %s350
    %s352 = sphi 0, %s350
    %s353 = sphi 0, %s352
    %s367 = sphi 0, %s353
    %s371 = sphi 0, %s371
    %s373 = sphi 0, %s371
    %s374 = sphi 0, %s373
    %s388 = sphi 0, %s374
  $region4: #{tpu_custom_call.1} parent=0 // loop_header_branch
    %25 = sbr.rel (%p23) target = $region8
  $region5: #{tpu_custom_call.1} parent=0 // loop_body
    %s27 = ssub.s32 %s22, 1
    %s28 = ssub.s32 %s22, 2
    %s38 = sadd.s32 1, %s31
    %p39 = scmp.ge.s32.totalorder %s38, 1
    %s40 = scalar_select %p39, 0, %s38
    %s41 = sadd.s32 1, %s30
    %s42 = scalar_select %p39, %s41, %s30
    %p43 = scmp.ge.s32.totalorder %s42, 2
    %s44 = scalar_select %p43, 0, %s42
    %s45 = sadd.s32 1, %s29
    %s46 = scalar_select %p43, %s45, %s29
    %p47 = scmp.ge.s32.totalorder %s46, 3
    %s48 = scalar_select %p47, 0, %s46
    %s49 = ssub.s32 %s30, %s44
    %s50 = ssub.s32 %s31, %s40
    %s51 = sor.u32 %s49, %s50
    %p52 = scmp.eq.s32.totalorder %s51, 0
    %s54 = sadd.s32 %s53, 1
    %s55 = scalar_select %p52, %s53, %s54
    %p58 = pneg %p52
    %p59 = scmp.eq.s32.totalorder %s22, 5
    %p60 = por %p58, %p59
    %p61 = scmp.ne.s32.totalorder %s53, %s56
    %p62 = scmp.eq.s32.totalorder %s22, 0
    %p63 = por %p61, %p62
    %p64 = scmp.ne.s32.totalorder %s53, %s56
    %p65 = scmp.eq.s32.totalorder %s27, 5
    %p66 = por %p64, %p65
    %p67 = scmp.ne.s32.totalorder %s56, %s57
    %p68 = scmp.eq.s32.totalorder %s27, 0
    %p69 = por %p67, %p68
    %p70 = scmp.ne.s32.totalorder %s56, %s57
    %p71 = scmp.eq.s32.totalorder %s28, 5
    %p72 = por %p70, %p71
    %p74 = scmp.ne.s32.totalorder %s57, %s73
    %p75 = scmp.eq.s32.totalorder %s28, 0
    %p76 = por %p74, %p75
    %s78 = sadd.s32 %s77, 1
    %p81 = scmp.eq.s32.totalorder %s22, 5
    %p82 = scmp.ne.s32.totalorder %s77, %s79
    %p83 = scmp.eq.s32.totalorder %s22, 0
    %p84 = por %p82, %p83
    %p85 = scmp.ne.s32.totalorder %s77, %s79
    %p86 = scmp.eq.s32.totalorder %s27, 5
    %p87 = por %p85, %p86
    %p88 = scmp.ne.s32.totalorder %s79, %s80
    %p89 = scmp.eq.s32.totalorder %s27, 0
    %p90 = por %p88, %p89
    %p91 = scmp.ne.s32.totalorder %s79, %s80
    %p92 = scmp.eq.s32.totalorder %s28, 5
    %p93 = por %p91, %p92
    %p95 = scmp.ne.s32.totalorder %s80, %s94
    %p96 = scmp.eq.s32.totalorder %s28, 0
    %p97 = por %p95, %p96
    %s99 = sadd.s32 %s98, 1
    %p102 = scmp.eq.s32.totalorder %s22, 5
    %p103 = scmp.ne.s32.totalorder %s98, %s100
    %p104 = scmp.eq.s32.totalorder %s22, 0
    %p105 = por %p103, %p104
    %p106 = scmp.ne.s32.totalorder %s98, %s100
    %p107 = scmp.eq.s32.totalorder %s27, 5
    %p108 = por %p106, %p107
    %p109 = scmp.ne.s32.totalorder %s100, %s101
    %p110 = scmp.eq.s32.totalorder %s27, 0
    %p111 = por %p109, %p110
    %p112 = scmp.ne.s32.totalorder %s100, %s101
    %p113 = scmp.eq.s32.totalorder %s28, 5
    %p114 = por %p112, %p113
    %p116 = scmp.ne.s32.totalorder %s101, %s115
    %p117 = scmp.eq.s32.totalorder %s28, 0
    %p118 = por %p116, %p117
    %s120 = sadd.s32 %s119, 1
    %p123 = scmp.eq.s32.totalorder %s22, 5
    %p124 = scmp.ne.s32.totalorder %s119, %s121
    %p125 = scmp.eq.s32.totalorder %s22, 0
    %p126 = por %p124, %p125
    %p127 = scmp.ne.s32.totalorder %s119, %s121
    %p128 = scmp.eq.s32.totalorder %s27, 5
    %p129 = por %p127, %p128
    %p130 = scmp.ne.s32.totalorder %s121, %s122
    %p131 = scmp.eq.s32.totalorder %s27, 0
    %p132 = por %p130, %p131
    %p133 = scmp.ne.s32.totalorder %s121, %s122
    %p134 = scmp.eq.s32.totalorder %s28, 5
    %p135 = por %p133, %p134
    %p137 = scmp.ne.s32.totalorder %s122, %s136
    %p138 = scmp.eq.s32.totalorder %s28, 0
    %p139 = por %p137, %p138
    %s141 = sadd.s32 %s140, 1
    %p144 = scmp.eq.s32.totalorder %s22, 5
    %p145 = scmp.ne.s32.totalorder %s140, %s142
    %p146 = scmp.eq.s32.totalorder %s22, 0
    %p147 = por %p145, %p146
    %p148 = scmp.ne.s32.totalorder %s140, %s142
    %p149 = scmp.eq.s32.totalorder %s27, 5
    %p150 = por %p148, %p149
    %p151 = scmp.ne.s32.totalorder %s142, %s143
    %p152 = scmp.eq.s32.totalorder %s27, 0
    %p153 = por %p151, %p152
    %p154 = scmp.ne.s32.totalorder %s142, %s143
    %p155 = scmp.eq.s32.totalorder %s28, 5
    %p156 = por %p154, %p155
    %p158 = scmp.ne.s32.totalorder %s143, %s157
    %p159 = scmp.eq.s32.totalorder %s28, 0
    %p160 = por %p158, %p159
    %s162 = sadd.s32 %s161, 1
    %p165 = scmp.eq.s32.totalorder %s22, 5
    %p166 = scmp.ne.s32.totalorder %s161, %s163
    %p167 = scmp.eq.s32.totalorder %s22, 0
    %p168 = por %p166, %p167
    %p169 = scmp.ne.s32.totalorder %s161, %s163
    %p170 = scmp.eq.s32.totalorder %s27, 5
    %p171 = por %p169, %p170
    %p172 = scmp.ne.s32.totalorder %s163, %s164
    %p173 = scmp.eq.s32.totalorder %s27, 0
    %p174 = por %p172, %p173
    %p175 = scmp.ne.s32.totalorder %s163, %s164
    %p176 = scmp.eq.s32.totalorder %s28, 5
    %p177 = por %p175, %p176
    %p179 = scmp.ne.s32.totalorder %s164, %s178
    %p180 = scmp.eq.s32.totalorder %s28, 0
    %p181 = por %p179, %p180
    %s183 = sadd.s32 %s182, 1
    %p186 = scmp.eq.s32.totalorder %s22, 5
    %p187 = scmp.ne.s32.totalorder %s182, %s184
    %p188 = scmp.eq.s32.totalorder %s22, 0
    %p189 = por %p187, %p188
    %p190 = scmp.ne.s32.totalorder %s182, %s184
    %p191 = scmp.eq.s32.totalorder %s27, 5
    %p192 = por %p190, %p191
    %p193 = scmp.ne.s32.totalorder %s184, %s185
    %p194 = scmp.eq.s32.totalorder %s27, 0
    %p195 = por %p193, %p194
    %p196 = scmp.ne.s32.totalorder %s184, %s185
    %p197 = scmp.eq.s32.totalorder %s28, 5
    %p198 = por %p196, %p197
    %p200 = scmp.ne.s32.totalorder %s185, %s199
    %p201 = scmp.eq.s32.totalorder %s28, 0
    %p202 = por %p200, %p201
    %s204 = sadd.s32 %s203, 1
    %p207 = scmp.eq.s32.totalorder %s22, 5
    %p208 = scmp.ne.s32.totalorder %s203, %s205
    %p209 = scmp.eq.s32.totalorder %s22, 0
    %p210 = por %p208, %p209
    %p211 = scmp.ne.s32.totalorder %s203, %s205
    %p212 = scmp.eq.s32.totalorder %s27, 5
    %p213 = por %p211, %p212
    %p214 = scmp.ne.s32.totalorder %s205, %s206
    %p215 = scmp.eq.s32.totalorder %s27, 0
    %p216 = por %p214, %p215
    %p217 = scmp.ne.s32.totalorder %s205, %s206
    %p218 = scmp.eq.s32.totalorder %s28, 5
    %p219 = por %p217, %p218
    %p221 = scmp.ne.s32.totalorder %s206, %s220
    %p222 = scmp.eq.s32.totalorder %s28, 0
    %p223 = por %p221, %p222
    %s225 = sadd.s32 %s224, 1
    %p228 = scmp.eq.s32.totalorder %s22, 5
    %p229 = scmp.ne.s32.totalorder %s224, %s226
    %p230 = scmp.eq.s32.totalorder %s22, 0
    %p231 = por %p229, %p230
    %p232 = scmp.ne.s32.totalorder %s224, %s226
    %p233 = scmp.eq.s32.totalorder %s27, 5
    %p234 = por %p232, %p233
    %p235 = scmp.ne.s32.totalorder %s226, %s227
    %p236 = scmp.eq.s32.totalorder %s27, 0
    %p237 = por %p235, %p236
    %p238 = scmp.ne.s32.totalorder %s226, %s227
    %p239 = scmp.eq.s32.totalorder %s28, 5
    %p240 = por %p238, %p239
    %p242 = scmp.ne.s32.totalorder %s227, %s241
    %p243 = scmp.eq.s32.totalorder %s28, 0
    %p244 = por %p242, %p243
    %s246 = sadd.s32 %s245, 1
    %p249 = scmp.eq.s32.totalorder %s22, 5
    %p250 = scmp.ne.s32.totalorder %s245, %s247
    %p251 = scmp.eq.s32.totalorder %s22, 0
    %p252 = por %p250, %p251
    %p253 = scmp.ne.s32.totalorder %s245, %s247
    %p254 = scmp.eq.s32.totalorder %s27, 5
    %p255 = por %p253, %p254
    %p256 = scmp.ne.s32.totalorder %s247, %s248
    %p257 = scmp.eq.s32.totalorder %s27, 0
    %p258 = por %p256, %p257
    %p259 = scmp.ne.s32.totalorder %s247, %s248
    %p260 = scmp.eq.s32.totalorder %s28, 5
    %p261 = por %p259, %p260
    %p263 = scmp.ne.s32.totalorder %s248, %s262
    %p264 = scmp.eq.s32.totalorder %s28, 0
    %p265 = por %p263, %p264
    %s267 = sadd.s32 %s266, 1
    %p270 = scmp.eq.s32.totalorder %s22, 5
    %p271 = scmp.ne.s32.totalorder %s266, %s268
    %p272 = scmp.eq.s32.totalorder %s22, 0
    %p273 = por %p271, %p272
    %p274 = scmp.ne.s32.totalorder %s266, %s268
    %p275 = scmp.eq.s32.totalorder %s27, 5
    %p276 = por %p274, %p275
    %p277 = scmp.ne.s32.totalorder %s268, %s269
    %p278 = scmp.eq.s32.totalorder %s27, 0
    %p279 = por %p277, %p278
    %p280 = scmp.ne.s32.totalorder %s268, %s269
    %p281 = scmp.eq.s32.totalorder %s28, 5
    %p282 = por %p280, %p281
    %p284 = scmp.ne.s32.totalorder %s269, %s283
    %p285 = scmp.eq.s32.totalorder %s28, 0
    %p286 = por %p284, %p285
    %s288 = sadd.s32 %s287, 1
    %p291 = scmp.eq.s32.totalorder %s22, 5
    %p292 = scmp.ne.s32.totalorder %s287, %s289
    %p293 = scmp.eq.s32.totalorder %s22, 0
    %p294 = por %p292, %p293
    %p295 = scmp.ne.s32.totalorder %s287, %s289
    %p296 = scmp.eq.s32.totalorder %s27, 5
    %p297 = por %p295, %p296
    %p298 = scmp.ne.s32.totalorder %s289, %s290
    %p299 = scmp.eq.s32.totalorder %s27, 0
    %p300 = por %p298, %p299
    %p301 = scmp.ne.s32.totalorder %s289, %s290
    %p302 = scmp.eq.s32.totalorder %s28, 5
    %p303 = por %p301, %p302
    %p305 = scmp.ne.s32.totalorder %s290, %s304
    %p306 = scmp.eq.s32.totalorder %s28, 0
    %p307 = por %p305, %p306
    %s309 = sadd.s32 %s308, 1
    %p312 = scmp.eq.s32.totalorder %s22, 5
    %p313 = scmp.ne.s32.totalorder %s308, %s310
    %p314 = scmp.eq.s32.totalorder %s22, 0
    %p315 = por %p313, %p314
    %p316 = scmp.ne.s32.totalorder %s308, %s310
    %p317 = scmp.eq.s32.totalorder %s27, 5
    %p318 = por %p316, %p317
    %p319 = scmp.ne.s32.totalorder %s310, %s311
    %p320 = scmp.eq.s32.totalorder %s27, 0
    %p321 = por %p319, %p320
    %p322 = scmp.ne.s32.totalorder %s310, %s311
    %p323 = scmp.eq.s32.totalorder %s28, 5
    %p324 = por %p322, %p323
    %p326 = scmp.ne.s32.totalorder %s311, %s325
    %p327 = scmp.eq.s32.totalorder %s28, 0
    %p328 = por %p326, %p327
    %s330 = sadd.s32 %s329, 1
    %p333 = scmp.eq.s32.totalorder %s22, 5
    %p334 = scmp.ne.s32.totalorder %s329, %s331
    %p335 = scmp.eq.s32.totalorder %s22, 0
    %p336 = por %p334, %p335
    %p337 = scmp.ne.s32.totalorder %s329, %s331
    %p338 = scmp.eq.s32.totalorder %s27, 5
    %p339 = por %p337, %p338
    %p340 = scmp.ne.s32.totalorder %s331, %s332
    %p341 = scmp.eq.s32.totalorder %s27, 0
    %p342 = por %p340, %p341
    %p343 = scmp.ne.s32.totalorder %s331, %s332
    %p344 = scmp.eq.s32.totalorder %s28, 5
    %p345 = por %p343, %p344
    %p347 = scmp.ne.s32.totalorder %s332, %s346
    %p348 = scmp.eq.s32.totalorder %s28, 0
    %p349 = por %p347, %p348
    %s351 = sadd.s32 %s350, 1
    %p354 = scmp.eq.s32.totalorder %s22, 5
    %p355 = scmp.ne.s32.totalorder %s350, %s352
    %p356 = scmp.eq.s32.totalorder %s22, 0
    %p357 = por %p355, %p356
    %p358 = scmp.ne.s32.totalorder %s350, %s352
    %p359 = scmp.eq.s32.totalorder %s27, 5
    %p360 = por %p358, %p359
    %p361 = scmp.ne.s32.totalorder %s352, %s353
    %p362 = scmp.eq.s32.totalorder %s27, 0
    %p363 = por %p361, %p362
    %p364 = scmp.ne.s32.totalorder %s352, %s353
    %p365 = scmp.eq.s32.totalorder %s28, 5
    %p366 = por %p364, %p365
    %p368 = scmp.ne.s32.totalorder %s353, %s367
    %p369 = scmp.eq.s32.totalorder %s28, 0
    %p370 = por %p368, %p369
    %s372 = sadd.s32 %s371, 1
    %p375 = scmp.eq.s32.totalorder %s22, 5
    %p376 = scmp.ne.s32.totalorder %s371, %s373
    %p377 = scmp.eq.s32.totalorder %s22, 0
    %p378 = por %p376, %p377
    %p379 = scmp.ne.s32.totalorder %s371, %s373
    %p380 = scmp.eq.s32.totalorder %s27, 5
    %p381 = por %p379, %p380
    %p382 = scmp.ne.s32.totalorder %s373, %s374
    %p383 = scmp.eq.s32.totalorder %s27, 0
    %p384 = por %p382, %p383
    %p385 = scmp.ne.s32.totalorder %s373, %s374
    %p386 = scmp.eq.s32.totalorder %s28, 5
    %p387 = por %p385, %p386
    %p389 = scmp.ne.s32.totalorder %s374, %s388
    %p390 = scmp.eq.s32.totalorder %s28, 0
    %p391 = por %p389, %p390
    %p392 = scmp.le.s32.totalorder 1, %s22
    %p393 = scmp.lt.s32.totalorder %s22, 7
    %p394 = pnand %p392, %p393
    %p395 = pneg %p394
    // Predicated region
    $region9: #{tpu_custom_call.1} parent=5 // pred_check
      _
    $region10: #{tpu_custom_call.1} parent=5 // pred_check_branch
      %397 = sbr.rel (%p394) target = $region12
    $region11: #{tpu_custom_call.1} parent=5 // pred_region
      %s398 = ssub.s32 %s22, 1
      // Predicated region
      $region13: #{tpu_custom_call.1} parent=11 // pred_check
        %p399 = pneg %p90
      $region14: #{tpu_custom_call.1} parent=11 // pred_check_branch
        %401 = sbr.rel (%p399) target = $region16
      $region15: #{tpu_custom_call.1} parent=11 // pred_region
        _
      $region16: #{tpu_custom_call.1} parent=11 // pred_fallthru
        _
      // Predicated region
      $region17: #{tpu_custom_call.1} parent=11 // pred_check
        %p402 = pneg %p111
      $region18: #{tpu_custom_call.1} parent=11 // pred_check_branch
        %404 = sbr.rel (%p402) target = $region20
      $region19: #{tpu_custom_call.1} parent=11 // pred_region
        _
      $region20: #{tpu_custom_call.1} parent=11 // pred_fallthru
        _
      // Predicated region
      $region21: #{tpu_custom_call.1} parent=11 // pred_check
        %p405 = pneg %p132
      $region22: #{tpu_custom_call.1} parent=11 // pred_check_branch
        %407 = sbr.rel (%p405) target = $region24
      $region23: #{tpu_custom_call.1} parent=11 // pred_region
        _
      $region24: #{tpu_custom_call.1} parent=11 // pred_fallthru
        _
      // Predicated region
      $region25: #{tpu_custom_call.1} parent=11 // pred_check
        %p408 = pneg %p153
      $region26: #{tpu_custom_call.1} parent=11 // pred_check_branch
        %410 = sbr.rel (%p408) target = $region28
      $region27: #{tpu_custom_call.1} parent=11 // pred_region
        _
      $region28: #{tpu_custom_call.1} parent=11 // pred_fallthru
        _
      // Predicated region
      $region29: #{tpu_custom_call.1} parent=11 // pred_check
        %p411 = pneg %p174
      $region30: #{tpu_custom_call.1} parent=11 // pred_check_branch
        %413 = sbr.rel (%p411) target = $region32
      $region31: #{tpu_custom_call.1} parent=11 // pred_region
        _
      $region32: #{tpu_custom_call.1} parent=11 // pred_fallthru
        _
      // Predicated region
      $region33: #{tpu_custom_call.1} parent=11 // pred_check
        %p414 = pneg %p195
      $region34: #{tpu_custom_call.1} parent=11 // pred_check_branch
        %416 = sbr.rel (%p414) target = $region36
      $region35: #{tpu_custom_call.1} parent=11 // pred_region
        _
      $region36: #{tpu_custom_call.1} parent=11 // pred_fallthru
        _
      // Predicated region
      $region37: #{tpu_custom_call.1} parent=11 // pred_check
        %p417 = pneg %p216
      $region38: #{tpu_custom_call.1} parent=11 // pred_check_branch
        %419 = sbr.rel (%p417) target = $region40
      $region39: #{tpu_custom_call.1} parent=11 // pred_region
        _
      $region40: #{tpu_custom_call.1} parent=11 // pred_fallthru
        _
      // Predicated region
      $region41: #{tpu_custom_call.1} parent=11 // pred_check
        %p420 = pneg %p237
      $region42: #{tpu_custom_call.1} parent=11 // pred_check_branch
        %422 = sbr.rel (%p420) target = $region44
      $region43: #{tpu_custom_call.1} parent=11 // pred_region
        _
      $region44: #{tpu_custom_call.1} parent=11 // pred_fallthru
        _
      // Predicated region
      $region45: #{tpu_custom_call.1} parent=11 // pred_check
        %p423 = pneg %p258
      $region46: #{tpu_custom_call.1} parent=11 // pred_check_branch
        %425 = sbr.rel (%p423) target = $region48
      $region47: #{tpu_custom_call.1} parent=11 // pred_region
        _
      $region48: #{tpu_custom_call.1} parent=11 // pred_fallthru
        _
    $region12: #{tpu_custom_call.1} parent=5 // pred_fallthru
      _
    %p426 = scmp.lt.s32.totalorder %s22, 6
    // Predicated region
    $region49: #{tpu_custom_call.1} parent=5 // pred_check
      %p427 = pneg %p426
    $region50: #{tpu_custom_call.1} parent=5 // pred_check_branch
      %429 = sbr.rel (%p427) target = $region52
    $region51: #{tpu_custom_call.1} parent=5 // pred_region
      // Predicated region
      $region53: #{tpu_custom_call.1} parent=51 // pred_check
        %p430 = pneg %p63
      $region54: #{tpu_custom_call.1} parent=51 // pred_check_branch
        %432 = sbr.rel (%p430) target = $region56
      $region55: #{tpu_custom_call.1} parent=51 // pred_region
        %p433 = scmp.lt.s32.totalorder %s30, 1
        %s434 = scalar_select %p433, %s30, 1
        %p435 = scmp.lt.s32.totalorder %s31, 0
        %s436 = scalar_select %p435, %s31, 0
        %s437 = sadd.s32 %s436, %s434
        %s438 = smul.addr %s437, 8
        %s439 = scalar_lea.vmem %s0, %s438
      $region56: #{tpu_custom_call.1} parent=51 // pred_fallthru
        _
    $region52: #{tpu_custom_call.1} parent=5 // pred_fallthru
      _
    %p440 = scmp.le.s32.totalorder 1, %s22
    %p441 = scmp.lt.s32.totalorder %s22, 7
    %p442 = pnand %p440, %p441
    %p443 = pneg %p442
    // Predicated region
    $region57: #{tpu_custom_call.1} parent=5 // pred_check
      _
    $region58: #{tpu_custom_call.1} parent=5 // pred_check_branch
      %445 = sbr.rel (%p442) target = $region60
    $region59: #{tpu_custom_call.1} parent=5 // pred_region
      %s446 = ssub.s32 %s22, 1
      %p447 = scmp.lt.s32.totalorder %s33, 1
      %s448 = scalar_select %p447, %s33, 1
      %p449 = scmp.lt.s32.totalorder %s34, 0
      %s450 = scalar_select %p449, %s34, 0
      %s451 = sadd.s32 %s450, %s448
      %s452 = smul.addr %s451, 8
      %s453 = scalar_lea.vmem %s0, %s452
      %p454 = pneg %p69
      %p455 = pneg %p66
      %p456 = pneg %p90
      %p457 = pneg %p87
      %p458 = pneg %p111
      %p459 = pneg %p108
      %p460 = pneg %p132
      %p461 = pneg %p129
      %p462 = pneg %p153
      %p463 = pneg %p150
      %p464 = pneg %p174
      %p465 = pneg %p171
      %p466 = pneg %p195
      %p467 = pneg %p192
      %p468 = pneg %p216
      %p469 = pneg %p213
      %p470 = pneg %p237
      %p471 = pneg %p234
      %p472 = pneg %p258
      %p473 = pneg %p255
      %p474 = pneg %p279
      %p475 = pneg %p276
      %p476 = pneg %p300
      %p477 = pneg %p297
      %p478 = pneg %p321
      %p479 = pneg %p318
      %p480 = pneg %p342
      %p481 = pneg %p339
      %p482 = pneg %p363
      %p483 = pneg %p360
      %p484 = pneg %p384
      %p485 = pneg %p381
      %p486 = scmp.lt.s32.totalorder %s33, 1
      %s487 = scalar_select %p486, %s33, 1
      %p488 = scmp.lt.s32.totalorder %s34, 0
      %s489 = scalar_select %p488, %s34, 0
      %s490 = sadd.s32 %s489, %s487
      %s491 = smul.addr %s490, 8
      %s492 = scalar_lea.vmem %s0, %s491
      %p493 = scmp.eq.s32.totalorder %s32, 0
      %p494 = scmp.eq.s32.totalorder %s33, 0
      %p495 = pnand %p493, %p494
      %p496 = pneg %p495
      %p497 = scmp.eq.s32.totalorder %s34, 0
      %p498 = pnand %p496, %p497
      %p499 = pneg %p498
      %p500 = scmp.eq.s32.totalorder %s33, 1
      %p501 = pnand %p500, %p497
      %p502 = pneg %p501
      // Predicated region
      $region61: #{tpu_custom_call.1} parent=59 // pred_check
        _
      $region62: #{tpu_custom_call.1} parent=59 // pred_check_branch
        %504 = sbr.rel (%p498) target = $region64
      $region63: #{tpu_custom_call.1} parent=59 // pred_region
        %vm505 = vcmask 7168
        %506 = vst.msk [vmem:[#allocation2] sm:$0xff] %vm505, 0.0
        %507 = vst.msk [vmem:[#allocation2 + $0x8] sm:$0xff] %vm505, 0.0
        %508 = vst.msk [vmem:[#allocation2 + $0x10] sm:$0xff] %vm505, 0.0
        %509 = vst.msk [vmem:[#allocation2 + $0x18] sm:$0xff] %vm505, 0.0
        %510 = vst.msk [vmem:[#allocation5] sm:$0xff] %vm505, 0.0
        %511 = vst.msk [vmem:[#allocation5 + $0x8] sm:$0xff] %vm505, 0.0
        %512 = vst.msk [vmem:[#allocation5 + $0x10] sm:$0xff] %vm505, 0.0
        %513 = vst.msk [vmem:[#allocation5 + $0x18] sm:$0xff] %vm505, 0.0
        %514 = vst.msk [vmem:[#allocation3] sm:$0xff] %vm505, 0.0
        %515 = vst.msk [vmem:[#allocation3 + $0x8] sm:$0xff] %vm505, 0.0
        %516 = vst.msk [vmem:[#allocation3 + $0x10] sm:$0xff] %vm505, 0.0
        %517 = vst.msk [vmem:[#allocation3 + $0x18] sm:$0xff] %vm505, 0.0
        %518 = vst.msk [vmem:[#allocation6] sm:$0xff] %vm505, 0.0
        %519 = vst.msk [vmem:[#allocation6 + $0x8] sm:$0xff] %vm505, 0.0
        %520 = vst.msk [vmem:[#allocation6 + $0x10] sm:$0xff] %vm505, 0.0
        %521 = vst.msk [vmem:[#allocation6 + $0x18] sm:$0xff] %vm505, 0.0
        %522 = vst.msk [vmem:[#allocation4] sm:$0xff] %vm505, 0.0
        %523 = vst.msk [vmem:[#allocation7] sm:$0xff] %vm505, 0.0
      $region64: #{tpu_custom_call.1} parent=59 // pred_fallthru
        _
      %v524 = vlaneseq
      %v525 = vand.u32 %v524, 127
      %s526 = smul.u32 %s34, 128
      %v527 = vstv %s526
      %v528 = vadd.s32 %v527, %v525
      %vm529 = vcmp.lt.s32.totalorder %v528, 16
      %v530 = vsel %vm529, 1, 0
      %v531 = vcvt.s32.f32 %v530
      %v532 = vld [vmem:[%s492] sm:$0xff]
      %533 = vst [vmem:[#allocation8] sm:$0xff] %v532
      %v534 = vld [vmem:[#allocation8] sm:$0xff]
      %v535 = vld [vmem:[%s1] sm:$0xff]
      %v536 = vld [vmem:[%s1 + $0x8] sm:$0xff]
      %v537 = vld [vmem:[%s1 + $0x10] sm:$0xff]
      %v538 = vld [vmem:[%s1 + $0x18] sm:$0xff]
      %vm539 = vcmask 64512
      %v541 = vsel %vm539, %v535, 0
      %v544 = vsel %vm539, %v536, 0
      %v547 = vsel %vm539, %v537, 0
      %v550 = vsel %vm539, %v538, 0
      %552 = vmatprep.subr.mxu0 0.0
      %553 = vmatpush1.msra.mxu0 %v534
      %554 = vmatprep.subr.mxu0 0.0
      %555 = vmatpush1.msra.mxu0 0.0
      %556 = vmatprep.subr.mxu0 0.0
      %557 = vmatpush1.msra.mxu0 0.0
      %558 = vmatprep.subr.mxu0 0.0
      %559 = vmatpush1.msra.mxu0 0.0
      %560 = vmatprep.subr.mxu0 0.0
      %561 = vmatpush1.msra.mxu0 0.0
      %562 = vmatprep.subr.mxu0 0.0
      %563 = vmatpush1.msra.mxu0 0.0
      %564 = vmatprep.subr.mxu0 0.0
      %565 = vmatpush1.msra.mxu0 0.0
      %566 = vmatprep.subr.mxu0 0.0
      %567 = vmatpush1.msra.mxu0 0.0
      %568 = vmatprep.subr.mxu0 0.0
      %569 = vmatpush1.msra.mxu0 0.0
      %570 = vmatprep.subr.mxu0 0.0
      %571 = vmatpush1.msra.mxu0 0.0
      %572 = vmatprep.subr.mxu0 0.0
      %573 = vmatpush1.msra.mxu0 0.0
      %574 = vmatprep.subr.mxu0 0.0
      %575 = vmatpush1.msra.mxu0 0.0
      %576 = vmatprep.subr.mxu0 0.0
      %577 = vmatpush1.msra.mxu0 0.0
      %578 = vmatprep.subr.mxu0 0.0
      %579 = vmatpush1.msra.mxu0 0.0
      %580 = vmatprep.subr.mxu0 0.0
      %581 = vmatpush1.msra.mxu0 0.0
      %582 = vmatprep.subr.mxu0 0.0
      %583 = vmatpush1.msra.mxu0 0.0
      %584 = vmatprep.subr.mxu0 0.0
      %585 = vmatpush1.msra.mxu0 0.0
      %586 = vmatprep.subr.mxu0 0.0
      %587 = vmatpush1.msra.mxu0 0.0
      %588 = vmatprep.subr.mxu0 0.0
      %589 = vmatpush1.msra.mxu0 0.0
      %590 = vmatprep.subr.mxu0 0.0
      %591 = vmatpush1.msra.mxu0 0.0
      %592 = vmatprep.subr.mxu0 0.0
      %593 = vmatpush1.msra.mxu0 0.0
      %594 = vmatprep.subr.mxu0 0.0
      %595 = vmatpush1.msra.mxu0 0.0
      %596 = vmatprep.subr.mxu0 0.0
      %597 = vmatpush1.msra.mxu0 0.0
      %598 = vmatprep.subr.mxu0 0.0
      %599 = vmatpush1.msra.mxu0 0.0
      %600 = vmatprep.subr.mxu0 0.0
      %601 = vmatpush1.msra.mxu0 0.0
      %602 = vmatprep.subr.mxu0 0.0
      %603 = vmatpush1.msra.mxu0 0.0
      %604 = vmatprep.subr.mxu0 0.0
      %605 = vmatpush1.msra.mxu0 0.0
      %606 = vmatprep.subr.mxu0 0.0
      %607 = vmatpush1.msra.mxu0 0.0
      %608 = vmatprep.subr.mxu0 0.0
      %609 = vmatpush1.msra.mxu0 0.0
      %610 = vmatprep.subr.mxu0 0.0
      %611 = vmatpush1.msra.mxu0 0.0
      %612 = vmatprep.subr.mxu0 0.0
      %613 = vmatpush1.msra.mxu0 0.0
      %614 = vmatprep.subr.mxu0 0.0
      %615 = vmatpush1.msra.mxu0 0.0
      %616 = vmatprep.mubr.f32.mxu0 0.0
      %617 = vmatmul.mubr.f32.gmra.mrb[0].mxu0 %v541
      %v618 = vpop.f32.mrb[0].mxu0
      %v619 = vadd.f32 0.0, %v618
      %v620 = vpop.f32.mrb[0].mxu0
      %621 = vmatprep.mubr.f32.mxu0 0.0
      %622 = vmatmul.mubr.f32.gmra.mrb[0].mxu0 %v544
      %v623 = vpop.f32.mrb[0].mxu0
      %v624 = vadd.f32 0.0, %v623
      %v625 = vpop.f32.mrb[0].mxu0
      %626 = vmatprep.mubr.f32.mxu0 0.0
      %627 = vmatmul.mubr.f32.gmra.mrb[0].mxu0 %v547
      %v628 = vpop.f32.mrb[0].mxu0
      %v629 = vadd.f32 0.0, %v628
      %v630 = vpop.f32.mrb[0].mxu0
      %631 = vmatprep.mubr.f32.mxu0 0.0
      %632 = vmatmul.mubr.f32.gmra.mrb[0].mxu0 %v550
      %v633 = vpop.f32.mrb[0].mxu0
      %v634 = vadd.f32 0.0, %v633
      %v635 = vpop.f32.mrb[0].mxu0
      %636 = vdwg.mxu0
      // Predicated region
      $region65: #{tpu_custom_call.1} parent=59 // pred_check
        %p637 = pneg %p493
      $region66: #{tpu_custom_call.1} parent=59 // pred_check_branch
        %639 = sbr.rel (%p637) target = $region68
      $region67: #{tpu_custom_call.1} parent=59 // pred_region
        %v640 = vmul.f32 %v619, %v531
        %v641 = vmul.f32 %v624, %v531
        %v642 = vmul.f32 %v629, %v531
        %v643 = vmul.f32 %v634, %v531
        %v644 = vld [vmem:[#allocation2] sm:$0xff]
        %v645 = vld [vmem:[#allocation2 + $0x8] sm:$0xff]
        %v646 = vld [vmem:[#allocation2 + $0x10] sm:$0xff]
        %v647 = vld [vmem:[#allocation2 + $0x18] sm:$0xff]
        %648 = vadd.xlane.f32.xlu0 %v640
        %v649 = vpop.xlane.xlu0 %648
        %650 = vadd.xlane.f32.xlu0 %v641
        %v651 = vpop.xlane.xlu0 %650
        %652 = vadd.xlane.f32.xlu0 %v642
        %v653 = vpop.xlane.xlu0 %652
        %654 = vadd.xlane.f32.xlu0 %v643
        %v655 = vpop.xlane.xlu0 %654
        %v656 = vadd.f32 %v644, %v649
        %v657 = vadd.f32 %v645, %v651
        %v658 = vadd.f32 %v646, %v653
        %v659 = vadd.f32 %v647, %v655
        %vm660 = vcmask 7168
        %661 = vst.msk [vmem:[#allocation2] sm:$0xff] %vm660, %v656
        %662 = vst.msk [vmem:[#allocation2 + $0x8] sm:$0xff] %vm660, %v657
        %663 = vst.msk [vmem:[#allocation2 + $0x10] sm:$0xff] %vm660, %v658
        %664 = vst.msk [vmem:[#allocation2 + $0x18] sm:$0xff] %vm660, %v659
        %v665 = vld [vmem:[#allocation5] sm:$0xff]
        %v666 = vld [vmem:[#allocation5 + $0x8] sm:$0xff]
        %v667 = vld [vmem:[#allocation5 + $0x10] sm:$0xff]
        %v668 = vld [vmem:[#allocation5 + $0x18] sm:$0xff]
        %v669 = vmul.f32 %v640, %v640
        %v670 = vmul.f32 %v641, %v641
        %v671 = vmul.f32 %v642, %v642
        %v672 = vmul.f32 %v643, %v643
        %673 = vadd.xlane.f32.xlu0 %v669
        %v674 = vpop.xlane.xlu0 %673
        %675 = vadd.xlane.f32.xlu0 %v670
        %v676 = vpop.xlane.xlu0 %675
        %677 = vadd.xlane.f32.xlu0 %v671
        %v678 = vpop.xlane.xlu0 %677
        %679 = vadd.xlane.f32.xlu0 %v672
        %v680 = vpop.xlane.xlu0 %679
        %v681 = vadd.f32 %v665, %v674
        %v682 = vadd.f32 %v666, %v676
        %v683 = vadd.f32 %v667, %v678
        %v684 = vadd.f32 %v668, %v680
        %685 = vst.msk [vmem:[#allocation5] sm:$0xff] %vm660, %v681
        %686 = vst.msk [vmem:[#allocation5 + $0x8] sm:$0xff] %vm660, %v682
        %687 = vst.msk [vmem:[#allocation5 + $0x10] sm:$0xff] %vm660, %v683
        %688 = vst.msk [vmem:[#allocation5 + $0x18] sm:$0xff] %vm660, %v684
        // Predicated region
        $region69: #{tpu_custom_call.1} parent=67 // pred_check
          _
        $region70: #{tpu_custom_call.1} parent=67 // pred_check_branch
          %690 = sbr.rel (%p501) target = $region72
        $region71: #{tpu_custom_call.1} parent=67 // pred_region
          %v691 = vld [vmem:[#allocation2] sm:$0xff]
          %v692 = vld [vmem:[#allocation2 + $0x8] sm:$0xff]
          %v693 = vld [vmem:[#allocation2 + $0x10] sm:$0xff]
          %v694 = vld [vmem:[#allocation2 + $0x18] sm:$0xff]
          %v695 = vmul.f32 %v691, 0.03125
          %v696 = vmul.f32 %v692, 0.03125
          %v697 = vmul.f32 %v693, 0.03125
          %v698 = vmul.f32 %v694, 0.03125
          %v699 = vld [vmem:[#allocation5] sm:$0xff]
          %v700 = vld [vmem:[#allocation5 + $0x8] sm:$0xff]
          %v701 = vld [vmem:[#allocation5 + $0x10] sm:$0xff]
          %v702 = vld [vmem:[#allocation5 + $0x18] sm:$0xff]
          %v703 = vmul.f32 %v699, 0.03125
          %v704 = vmul.f32 %v700, 0.03125
          %v705 = vmul.f32 %v701, 0.03125
          %v706 = vmul.f32 %v702, 0.03125
          %v707 = vmul.f32 %v695, %v695
          %v708 = vmul.f32 %v696, %v696
          %v709 = vmul.f32 %v697, %v697
          %v710 = vmul.f32 %v698, %v698
          %v711 = vsub.f32 %v703, %v707
          %v712 = vsub.f32 %v704, %v708
          %v713 = vsub.f32 %v705, %v709
          %v714 = vsub.f32 %v706, %v710
          %v715 = vmax.f32 %v711, 0.0
          %v716 = vmax.f32 %v712, 0.0
          %v717 = vmax.f32 %v713, 0.0
          %v718 = vmax.f32 %v714, 0.0
          %v719 = vld [vmem:[%s4] sm:$0xff]
          %v720 = vld [vmem:[%s4 + $0x8] sm:$0xff]
          %v721 = vld [vmem:[%s4 + $0x10] sm:$0xff]
          %v722 = vld [vmem:[%s4 + $0x18] sm:$0xff]
          %v723 = vadd.f32 %v715, 1e-05
          %v724 = vadd.f32 %v716, 1e-05
          %v725 = vadd.f32 %v717, 1e-05
          %v726 = vadd.f32 %v718, 1e-05
          %v727 = vrsqrt.pop %v723
          %v728 = vrsqrt.pop %v724
          %v729 = vrsqrt.pop %v725
          %v730 = vrsqrt.pop %v726
          %v731 = vmul.f32 %v719, %v727
          %v732 = vmul.f32 %v720, %v728
          %v733 = vmul.f32 %v721, %v729
          %v734 = vmul.f32 %v722, %v730
          %735 = vst.msk [vmem:[%s10] sm:$0xff] %vm660, %v731
          %736 = vst.msk [vmem:[%s10 + $0x8] sm:$0xff] %vm660, %v732
          %737 = vst.msk [vmem:[%s10 + $0x10] sm:$0xff] %vm660, %v733
          %738 = vst.msk [vmem:[%s10 + $0x18] sm:$0xff] %vm660, %v734
          %v739 = vld [vmem:[%s7] sm:$0xff]
          %v740 = vld [vmem:[%s7 + $0x8] sm:$0xff]
          %v741 = vld [vmem:[%s7 + $0x10] sm:$0xff]
          %v742 = vld [vmem:[%s7 + $0x18] sm:$0xff]
          %v743 = vmul.f32 %v695, %v731
          %v744 = vmul.f32 %v696, %v732
          %v745 = vmul.f32 %v697, %v733
          %v746 = vmul.f32 %v698, %v734
          %v747 = vsub.f32 %v739, %v743
          %v748 = vsub.f32 %v740, %v744
          %v749 = vsub.f32 %v741, %v745
          %v750 = vsub.f32 %v742, %v746
          %751 = vst.msk [vmem:[%s13] sm:$0xff] %vm660, %v747
          %752 = vst.msk [vmem:[%s13 + $0x8] sm:$0xff] %vm660, %v748
          %753 = vst.msk [vmem:[%s13 + $0x10] sm:$0xff] %vm660, %v749
          %754 = vst.msk [vmem:[%s13 + $0x18] sm:$0xff] %vm660, %v750
        $region72: #{tpu_custom_call.1} parent=67 // pred_fallthru
          _
      $region68: #{tpu_custom_call.1} parent=59 // pred_fallthru
        _
      %p755 = scmp.gt.s32.totalorder %s32, 0
      // Predicated region
      $region73: #{tpu_custom_call.1} parent=59 // pred_check
        %p756 = pneg %p755
      $region74: #{tpu_custom_call.1} parent=59 // pred_check_branch
        %758 = sbr.rel (%p756) target = $region76
      $region75: #{tpu_custom_call.1} parent=59 // pred_region
        %v759 = vld [vmem:[%s10] sm:$0xff]
        %v760 = vld [vmem:[%s10 + $0x8] sm:$0xff]
        %v761 = vld [vmem:[%s10 + $0x10] sm:$0xff]
        %v762 = vld [vmem:[%s10 + $0x18] sm:$0xff]
        %764 = vset.pattern.permute.xlu0 0
        %765 = vperm.xlu0 %764, %v759
        %v766 = vpop.permute.xlu0 %765
        %769 = vset.pattern.permute.xlu0 0
        %770 = vperm.xlu0 %769, %v760
        %v771 = vpop.permute.xlu0 %770
        %774 = vset.pattern.permute.xlu0 0
        %775 = vperm.xlu0 %774, %v761
        %v776 = vpop.permute.xlu0 %775
        %779 = vset.pattern.permute.xlu0 0
        %780 = vperm.xlu0 %779, %v762
        %v781 = vpop.permute.xlu0 %780
        %v783 = vmul.f32 %v619, %v766
        %v784 = vmul.f32 %v624, %v771
        %v785 = vmul.f32 %v629, %v776
        %v786 = vmul.f32 %v634, %v781
        %v787 = vld [vmem:[%s13] sm:$0xff]
        %v788 = vld [vmem:[%s13 + $0x8] sm:$0xff]
        %v789 = vld [vmem:[%s13 + $0x10] sm:$0xff]
        %v790 = vld [vmem:[%s13 + $0x18] sm:$0xff]
        %792 = vset.pattern.permute.xlu0 0
        %793 = vperm.xlu0 %792, %v787
        %v794 = vpop.permute.xlu0 %793
        %797 = vset.pattern.permute.xlu0 0
        %798 = vperm.xlu0 %797, %v788
        %v799 = vpop.permute.xlu0 %798
        %802 = vset.pattern.permute.xlu0 0
        %803 = vperm.xlu0 %802, %v789
        %v804 = vpop.permute.xlu0 %803
        %807 = vset.pattern.permute.xlu0 0
        %808 = vperm.xlu0 %807, %v790
        %v809 = vpop.permute.xlu0 %808
        %v811 = vadd.f32 %v783, %v794
        %v812 = vadd.f32 %v784, %v799
        %v813 = vadd.f32 %v785, %v804
        %v814 = vadd.f32 %v786, %v809
        %v815 = vand.u32 2147483647, %v811
        %vm816 = vcmp.le.f32.partialorder %v815, 0.7853982
        %vm817 = vcmp.lt.s32.totalorder %v811, 0
        %v818 = vand.u32 %v811, 2139095040
        %v819 = vshrl.u32 %v818, 23
        %v820 = vsub.s32 %v819, 127
        %v821 = vand.u32 2147483647, %v811
        %v822 = vand.u32 %v821, 8388607
        %v823 = vor.u32 %v822, 8388608
        %v824 = vsub.s32 0, %v823
        %v825 = vadd.s32 %v820, 1
        %vm826 = vcmp.gt.s32.totalorder %v825, 0
        %v827 = vsel %vm826, %v825, 0
        %v828 = vshrl.u32 %v827, 5
        %v829 = vand.u32 %v827, 31
        %v830 = vsub.s32 32, %v829
        %v831 = vshrl.u32 683565275, %v830
        %v832 = vshll.u32 683565275, %v829
        %v833 = vshrl.u32 2475754826, %v830
        %v834 = vor.u32 %v832, %v833
        %v835 = vshll.u32 2475754826, %v829
        %v836 = vshrl.u32 2131351028, %v830
        %v837 = vor.u32 %v835, %v836
        %v838 = vshll.u32 2131351028, %v829
        %v839 = vshrl.u32 2102212464, %v830
        %v840 = vor.u32 %v838, %v839
        %v841 = vshll.u32 2102212464, %v829
        %v842 = vshrl.u32 920167782, %v830
        %v843 = vor.u32 %v841, %v842
        %v844 = vshll.u32 920167782, %v829
        %v845 = vshrl.u32 1326507024, %v830
        %v846 = vor.u32 %v844, %v845
        %vm847 = vcmp.lt.s32.totalorder %v828, 1
        %vm848 = vcmp.lt.s32.totalorder %v828, 2
        %vm849 = vcmp.lt.s32.totalorder %v828, 3
        %vm850 = vcmp.lt.s32.totalorder %v828, 4
        %v851 = vsel %vm847, %v831, %v834
        %v852 = vsel %vm850, %v840, 2102212464
        %v853 = vsel %vm849, %v837, %v852
        %v854 = vsel %vm848, %v851, %v853
        %v855 = vsel %vm847, %v834, %v837
        %v856 = vsel %vm850, %v843, 920167782
        %v857 = vsel %vm849, %v840, %v856
        %v858 = vsel %vm848, %v855, %v857
        %v859 = vsel %vm847, %v837, %v840
        %v860 = vsel %vm850, %v846, 1326507024
        %v861 = vsel %vm849, %v843, %v860
        %v862 = vsel %vm848, %v859, %v861
        %v863 = vshll.u32 %v823, 8
        %v864 = vmul.u32.u64.compose %v863, %v862
        %v865 = vextract.low.u32 %v864
        %v866 = vextract.high.u32 %v864
        %v867 = vmul.u32.u64.compose %v863, %v858
        %v868 = vextract.low.u32 %v867
        %v869 = vextract.high.u32 %v867
        %v870 = vmul.u32 %v863, %v854
        %v871 = vadd.s32 %v866, %v868
        %vm872 = vc.u32 %v866, %v868
        %v873 = vadd.s32 %v869, 1
        %v874 = vsel %vm872, %v873, %v869
        %v875 = vadd.s32 %v870, %v874
        %v876 = vadd.s32 %v875, 536870912
        %v877 = vshrl.u32 %v876, 30
        %v878 = vshll.u32 %v877, 30
        %v879 = vsub.s32 %v875, %v878
        %vm880 = vcmp.lt.s32.totalorder %v879, 0
        %v881 = vsub.s32 0, %v879
        %v882 = vsel %vm880, %v881, %v879
        %v883 = vclz %v882
        %v884 = vsub.s32 %v883, 2
        %vm885 = vcmp.gt.s32.totalorder 0, %v884
        %v886 = vsel %vm885, 0, %v884
        %v887 = vsub.s32 32, %v886
        %v888 = vshll.u32 %v879, %v886
        %v889 = vshrl.u32 %v871, %v887
        %v890 = vor.u32 %v888, %v889
        %v891 = vsub.s32 4294967266, %v886
        %v892 = vadd.s32 %v891, 127
        %v893 = vshll.u32 %v892, 23
        %v894 = vor.u32 4788187, %v893
        %v895 = vand.u32 2147483647, %v894
        %v897 = vcvt.s32.f32 %v890
        %v898 = vmul.f32 %v897, %v895
        %v899 = vxor.u32 %v898, 2147483648
        %v900 = vsel %vm817, %v899, %v898
        %v901 = vsub.s32 4, %v877
        %v902 = vsel %vm817, %v901, %v877
        %v903 = vsel %vm816, %v811, %v900
        %v904 = vsel %vm816, 0, %v902
        %v905 = vcosq.f32.pop %v903
        %v906 = vsinq.f32.pop %v903
        %vm907 = vweird.f32 %v811
        %v908 = vadd.s32 %v904, 3
        %v909 = vand.u32 %v908, 3
        %vm910 = vcmp.lt.s32.totalorder %v909, 2
        %vm911 = vcmp.eq.s32.totalorder %v909, 0
        %v912 = vxor.u32 %v906, 2147483648
        %v913 = vsel %vm911, %v905, %v912
        %vm914 = vcmp.eq.s32.totalorder %v909, 2
        %v915 = vxor.u32 %v905, 2147483648
        %v916 = vsel %vm914, %v915, %v906
        %v917 = vsel %vm910, %v913, %v916
        %v918 = vsel %vm907, nan, %v917
        %v919 = vand.u32 2147483647, %v812
        %vm920 = vcmp.le.f32.partialorder %v919, 0.7853982
        %vm921 = vcmp.lt.s32.totalorder %v812, 0
        %v922 = vand.u32 %v812, 2139095040
        %v923 = vshrl.u32 %v922, 23
        %v924 = vsub.s32 %v923, 127
        %v925 = vand.u32 2147483647, %v812
        %v926 = vand.u32 %v925, 8388607
        %v927 = vor.u32 %v926, 8388608
        %v928 = vsub.s32 0, %v927
        %v929 = vadd.s32 %v924, 1
        %vm930 = vcmp.gt.s32.totalorder %v929, 0
        %v931 = vsel %vm930, %v929, 0
        %v932 = vshrl.u32 %v931, 5
        %v933 = vand.u32 %v931, 31
        %v934 = vsub.s32 32, %v933
        %v935 = vshrl.u32 683565275, %v934
        %v936 = vshll.u32 683565275, %v933
        %v937 = vshrl.u32 2475754826, %v934
        %v938 = vor.u32 %v936, %v937
        %v939 = vshll.u32 2475754826, %v933
        %v940 = vshrl.u32 2131351028, %v934
        %v941 = vor.u32 %v939, %v940
        %v942 = vshll.u32 2131351028, %v933
        %v943 = vshrl.u32 2102212464, %v934
        %v944 = vor.u32 %v942, %v943
        %v945 = vshll.u32 2102212464, %v933
        %v946 = vshrl.u32 920167782, %v934
        %v947 = vor.u32 %v945, %v946
        %v948 = vshll.u32 920167782, %v933
        %v949 = vshrl.u32 1326507024, %v934
        %v950 = vor.u32 %v948, %v949
        %vm951 = vcmp.lt.s32.totalorder %v932, 1
        %vm952 = vcmp.lt.s32.totalorder %v932, 2
        %vm953 = vcmp.lt.s32.totalorder %v932, 3
        %vm954 = vcmp.lt.s32.totalorder %v932, 4
        %v955 = vsel %vm951, %v935, %v938
        %v956 = vsel %vm954, %v944, 2102212464
        %v957 = vsel %vm953, %v941, %v956
        %v958 = vsel %vm952, %v955, %v957
        %v959 = vsel %vm951, %v938, %v941
        %v960 = vsel %vm954, %v947, 920167782
        %v961 = vsel %vm953, %v944, %v960
        %v962 = vsel %vm952, %v959, %v961
        %v963 = vsel %vm951, %v941, %v944
        %v964 = vsel %vm954, %v950, 1326507024
        %v965 = vsel %vm953, %v947, %v964
        %v966 = vsel %vm952, %v963, %v965
        %v967 = vshll.u32 %v927, 8
        %v968 = vmul.u32.u64.compose %v967, %v966
        %v969 = vextract.low.u32 %v968
        %v970 = vextract.high.u32 %v968
        %v971 = vmul.u32.u64.compose %v967, %v962
        %v972 = vextract.low.u32 %v971
        %v973 = vextract.high.u32 %v971
        %v974 = vmul.u32 %v967, %v958
        %v975 = vadd.s32 %v970, %v972
        %vm976 = vc.u32 %v970, %v972
        %v977 = vadd.s32 %v973, 1
        %v978 = vsel %vm976, %v977, %v973
        %v979 = vadd.s32 %v974, %v978
        %v980 = vadd.s32 %v979, 536870912
        %v981 = vshrl.u32 %v980, 30
        %v982 = vshll.u32 %v981, 30
        %v983 = vsub.s32 %v979, %v982
        %vm984 = vcmp.lt.s32.totalorder %v983, 0
        %v985 = vsub.s32 0, %v983
        %v986 = vsel %vm984, %v985, %v983
        %v987 = vclz %v986
        %v988 = vsub.s32 %v987, 2
        %vm989 = vcmp.gt.s32.totalorder 0, %v988
        %v990 = vsel %vm989, 0, %v988
        %v991 = vsub.s32 32, %v990
        %v992 = vshll.u32 %v983, %v990
        %v993 = vshrl.u32 %v975, %v991
        %v994 = vor.u32 %v992, %v993
        %v995 = vsub.s32 4294967266, %v990
        %v996 = vadd.s32 %v995, 127
        %v997 = vshll.u32 %v996, 23
        %v998 = vor.u32 4788187, %v997
        %v999 = vand.u32 2147483647, %v998
        %v1001 = vcvt.s32.f32 %v994
        %v1002 = vmul.f32 %v1001, %v999
        %v1003 = vxor.u32 %v1002, 2147483648
        %v1004 = vsel %vm921, %v1003, %v1002
        %v1005 = vsub.s32 4, %v981
        %v1006 = vsel %vm921, %v1005, %v981
        %v1007 = vsel %vm920, %v812, %v1004
        %v1008 = vsel %vm920, 0, %v1006
        %v1009 = vcosq.f32.pop %v1007
        %v1010 = vsinq.f32.pop %v1007
        %vm1011 = vweird.f32 %v812
        %v1012 = vadd.s32 %v1008, 3
        %v1013 = vand.u32 %v1012, 3
        %vm1014 = vcmp.lt.s32.totalorder %v1013, 2
        %vm1015 = vcmp.eq.s32.totalorder %v1013, 0
        %v1016 = vxor.u32 %v1010, 2147483648
        %v1017 = vsel %vm1015, %v1009, %v1016
        %vm1018 = vcmp.eq.s32.totalorder %v1013, 2
        %v1019 = vxor.u32 %v1009, 2147483648
        %v1020 = vsel %vm1018, %v1019, %v1010
        %v1021 = vsel %vm1014, %v1017, %v1020
        %v1022 = vsel %vm1011, nan, %v1021
        %v1023 = vand.u32 2147483647, %v813
        %vm1024 = vcmp.le.f32.partialorder %v1023, 0.7853982
        %vm1025 = vcmp.lt.s32.totalorder %v813, 0
        %v1026 = vand.u32 %v813, 2139095040
        %v1027 = vshrl.u32 %v1026, 23
        %v1028 = vsub.s32 %v1027, 127
        %v1029 = vand.u32 2147483647, %v813
        %v1030 = vand.u32 %v1029, 8388607
        %v1031 = vor.u32 %v1030, 8388608
        %v1032 = vsub.s32 0, %v1031
        %v1033 = vadd.s32 %v1028, 1
        %vm1034 = vcmp.gt.s32.totalorder %v1033, 0
        %v1035 = vsel %vm1034, %v1033, 0
        %v1036 = vshrl.u32 %v1035, 5
        %v1037 = vand.u32 %v1035, 31
        %v1038 = vsub.s32 32, %v1037
        %v1039 = vshrl.u32 683565275, %v1038
        %v1040 = vshll.u32 683565275, %v1037
        %v1041 = vshrl.u32 2475754826, %v1038
        %v1042 = vor.u32 %v1040, %v1041
        %v1043 = vshll.u32 2475754826, %v1037
        %v1044 = vshrl.u32 2131351028, %v1038
        %v1045 = vor.u32 %v1043, %v1044
        %v1046 = vshll.u32 2131351028, %v1037
        %v1047 = vshrl.u32 2102212464, %v1038
        %v1048 = vor.u32 %v1046, %v1047
        %v1049 = vshll.u32 2102212464, %v1037
        %v1050 = vshrl.u32 920167782, %v1038
        %v1051 = vor.u32 %v1049, %v1050
        %v1052 = vshll.u32 920167782, %v1037
        %v1053 = vshrl.u32 1326507024, %v1038
        %v1054 = vor.u32 %v1052, %v1053
        %vm1055 = vcmp.lt.s32.totalorder %v1036, 1
        %vm1056 = vcmp.lt.s32.totalorder %v1036, 2
        %vm1057 = vcmp.lt.s32.totalorder %v1036, 3
        %vm1058 = vcmp.lt.s32.totalorder %v1036, 4
        %v1059 = vsel %vm1055, %v1039, %v1042
        %v1060 = vsel %vm1058, %v1048, 2102212464
        %v1061 = vsel %vm1057, %v1045, %v1060
        %v1062 = vsel %vm1056, %v1059, %v1061
        %v1063 = vsel %vm1055, %v1042, %v1045
        %v1064 = vsel %vm1058, %v1051, 920167782
        %v1065 = vsel %vm1057, %v1048, %v1064
        %v1066 = vsel %vm1056, %v1063, %v1065
        %v1067 = vsel %vm1055, %v1045, %v1048
        %v1068 = vsel %vm1058, %v1054, 1326507024
        %v1069 = vsel %vm1057, %v1051, %v1068
        %v1070 = vsel %vm1056, %v1067, %v1069
        %v1071 = vshll.u32 %v1031, 8
        %v1072 = vmul.u32.u64.compose %v1071, %v1070
        %v1073 = vextract.low.u32 %v1072
        %v1074 = vextract.high.u32 %v1072
        %v1075 = vmul.u32.u64.compose %v1071, %v1066
        %v1076 = vextract.low.u32 %v1075
        %v1077 = vextract.high.u32 %v1075
        %v1078 = vmul.u32 %v1071, %v1062
        %v1079 = vadd.s32 %v1074, %v1076
        %vm1080 = vc.u32 %v1074, %v1076
        %v1081 = vadd.s32 %v1077, 1
        %v1082 = vsel %vm1080, %v1081, %v1077
        %v1083 = vadd.s32 %v1078, %v1082
        %v1084 = vadd.s32 %v1083, 536870912
        %v1085 = vshrl.u32 %v1084, 30
        %v1086 = vshll.u32 %v1085, 30
        %v1087 = vsub.s32 %v1083, %v1086
        %vm1088 = vcmp.lt.s32.totalorder %v1087, 0
        %v1089 = vsub.s32 0, %v1087
        %v1090 = vsel %vm1088, %v1089, %v1087
        %v1091 = vclz %v1090
        %v1092 = vsub.s32 %v1091, 2
        %vm1093 = vcmp.gt.s32.totalorder 0, %v1092
        %v1094 = vsel %vm1093, 0, %v1092
        %v1095 = vsub.s32 32, %v1094
        %v1096 = vshll.u32 %v1087, %v1094
        %v1097 = vshrl.u32 %v1079, %v1095
        %v1098 = vor.u32 %v1096, %v1097
        %v1099 = vsub.s32 4294967266, %v1094
        %v1100 = vadd.s32 %v1099, 127
        %v1101 = vshll.u32 %v1100, 23
        %v1102 = vor.u32 4788187, %v1101
        %v1103 = vand.u32 2147483647, %v1102
        %v1105 = vcvt.s32.f32 %v1098
        %v1106 = vmul.f32 %v1105, %v1103
        %v1107 = vxor.u32 %v1106, 2147483648
        %v1108 = vsel %vm1025, %v1107, %v1106
        %v1109 = vsub.s32 4, %v1085
        %v1110 = vsel %vm1025, %v1109, %v1085
        %v1111 = vsel %vm1024, %v813, %v1108
        %v1112 = vsel %vm1024, 0, %v1110
        %v1113 = vcosq.f32.pop %v1111
        %v1114 = vsinq.f32.pop %v1111
        %vm1115 = vweird.f32 %v813
        %v1116 = vadd.s32 %v1112, 3
        %v1117 = vand.u32 %v1116, 3
        %vm1118 = vcmp.lt.s32.totalorder %v1117, 2
        %vm1119 = vcmp.eq.s32.totalorder %v1117, 0
        %v1120 = vxor.u32 %v1114, 2147483648
        %v1121 = vsel %vm1119, %v1113, %v1120
        %vm1122 = vcmp.eq.s32.totalorder %v1117, 2
        %v1123 = vxor.u32 %v1113, 2147483648
        %v1124 = vsel %vm1122, %v1123, %v1114
        %v1125 = vsel %vm1118, %v1121, %v1124
        %v1126 = vsel %vm1115, nan, %v1125
        %v1127 = vand.u32 2147483647, %v814
        %vm1128 = vcmp.le.f32.partialorder %v1127, 0.7853982
        %vm1129 = vcmp.lt.s32.totalorder %v814, 0
        %v1130 = vand.u32 %v814, 2139095040
        %v1131 = vshrl.u32 %v1130, 23
        %v1132 = vsub.s32 %v1131, 127
        %v1133 = vand.u32 2147483647, %v814
        %v1134 = vand.u32 %v1133, 8388607
        %v1135 = vor.u32 %v1134, 8388608
        %v1136 = vsub.s32 0, %v1135
        %v1137 = vadd.s32 %v1132, 1
        %vm1138 = vcmp.gt.s32.totalorder %v1137, 0
        %v1139 = vsel %vm1138, %v1137, 0
        %v1140 = vshrl.u32 %v1139, 5
        %v1141 = vand.u32 %v1139, 31
        %v1142 = vsub.s32 32, %v1141
        %v1143 = vshrl.u32 683565275, %v1142
        %v1144 = vshll.u32 683565275, %v1141
        %v1145 = vshrl.u32 2475754826, %v1142
        %v1146 = vor.u32 %v1144, %v1145
        %v1147 = vshll.u32 2475754826, %v1141
        %v1148 = vshrl.u32 2131351028, %v1142
        %v1149 = vor.u32 %v1147, %v1148
        %v1150 = vshll.u32 2131351028, %v1141
        %v1151 = vshrl.u32 2102212464, %v1142
        %v1152 = vor.u32 %v1150, %v1151
        %v1153 = vshll.u32 2102212464, %v1141
        %v1154 = vshrl.u32 920167782, %v1142
        %v1155 = vor.u32 %v1153, %v1154
        %v1156 = vshll.u32 920167782, %v1141
        %v1157 = vshrl.u32 1326507024, %v1142
        %v1158 = vor.u32 %v1156, %v1157
        %vm1159 = vcmp.lt.s32.totalorder %v1140, 1
        %vm1160 = vcmp.lt.s32.totalorder %v1140, 2
        %vm1161 = vcmp.lt.s32.totalorder %v1140, 3
        %vm1162 = vcmp.lt.s32.totalorder %v1140, 4
        %v1163 = vsel %vm1159, %v1143, %v1146
        %v1164 = vsel %vm1162, %v1152, 2102212464
        %v1165 = vsel %vm1161, %v1149, %v1164
        %v1166 = vsel %vm1160, %v1163, %v1165
        %v1167 = vsel %vm1159, %v1146, %v1149
        %v1168 = vsel %vm1162, %v1155, 920167782
        %v1169 = vsel %vm1161, %v1152, %v1168
        %v1170 = vsel %vm1160, %v1167, %v1169
        %v1171 = vsel %vm1159, %v1149, %v1152
        %v1172 = vsel %vm1162, %v1158, 1326507024
        %v1173 = vsel %vm1161, %v1155, %v1172
        %v1174 = vsel %vm1160, %v1171, %v1173
        %v1175 = vshll.u32 %v1135, 8
        %v1176 = vmul.u32.u64.compose %v1175, %v1174
        %v1177 = vextract.low.u32 %v1176
        %v1178 = vextract.high.u32 %v1176
        %v1179 = vmul.u32.u64.compose %v1175, %v1170
        %v1180 = vextract.low.u32 %v1179
        %v1181 = vextract.high.u32 %v1179
        %v1182 = vmul.u32 %v1175, %v1166
        %v1183 = vadd.s32 %v1178, %v1180
        %vm1184 = vc.u32 %v1178, %v1180
        %v1185 = vadd.s32 %v1181, 1
        %v1186 = vsel %vm1184, %v1185, %v1181
        %v1187 = vadd.s32 %v1182, %v1186
        %v1188 = vadd.s32 %v1187, 536870912
        %v1189 = vshrl.u32 %v1188, 30
        %v1190 = vshll.u32 %v1189, 30
        %v1191 = vsub.s32 %v1187, %v1190
        %vm1192 = vcmp.lt.s32.totalorder %v1191, 0
        %v1193 = vsub.s32 0, %v1191
        %v1194 = vsel %vm1192, %v1193, %v1191
        %v1195 = vclz %v1194
        %v1196 = vsub.s32 %v1195, 2
        %vm1197 = vcmp.gt.s32.totalorder 0, %v1196
        %v1198 = vsel %vm1197, 0, %v1196
        %v1199 = vsub.s32 32, %v1198
        %v1200 = vshll.u32 %v1191, %v1198
        %v1201 = vshrl.u32 %v1183, %v1199
        %v1202 = vor.u32 %v1200, %v1201
        %v1203 = vsub.s32 4294967266, %v1198
        %v1204 = vadd.s32 %v1203, 127
        %v1205 = vshll.u32 %v1204, 23
        %v1206 = vor.u32 4788187, %v1205
        %v1207 = vand.u32 2147483647, %v1206
        %v1209 = vcvt.s32.f32 %v1202
        %v1210 = vmul.f32 %v1209, %v1207
        %v1211 = vxor.u32 %v1210, 2147483648
        %v1212 = vsel %vm1129, %v1211, %v1210
        %v1213 = vsub.s32 4, %v1189
        %v1214 = vsel %vm1129, %v1213, %v1189
        %v1215 = vsel %vm1128, %v814, %v1212
        %v1216 = vsel %vm1128, 0, %v1214
        %v1217 = vcosq.f32.pop %v1215
        %v1218 = vsinq.f32.pop %v1215
        %vm1219 = vweird.f32 %v814
        %v1220 = vadd.s32 %v1216, 3
        %v1221 = vand.u32 %v1220, 3
        %vm1222 = vcmp.lt.s32.totalorder %v1221, 2
        %vm1223 = vcmp.eq.s32.totalorder %v1221, 0
        %v1224 = vxor.u32 %v1218, 2147483648
        %v1225 = vsel %vm1223, %v1217, %v1224
        %vm1226 = vcmp.eq.s32.totalorder %v1221, 2
        %v1227 = vxor.u32 %v1217, 2147483648
        %v1228 = vsel %vm1226, %v1227, %v1218
        %v1229 = vsel %vm1222, %v1225, %v1228
        %v1230 = vsel %vm1219, nan, %v1229
        %1231 = vst [vmem:[#allocation8] sm:$0xff] %v918
        %1232 = vst [vmem:[#allocation8 + $0x8] sm:$0xff] %v1022
        %1233 = vst [vmem:[#allocation8 + $0x10] sm:$0xff] %v1126
        %1234 = vst [vmem:[#allocation8 + $0x18] sm:$0xff] %v1230
      $region76: #{tpu_custom_call.1} parent=59 // pred_fallthru
        _
      %p1235 = scmp.ge.s32.totalorder %s32, 1
      // Predicated region
      $region77: #{tpu_custom_call.1} parent=59 // pred_check
        %p1236 = pneg %p1235
      $region78: #{tpu_custom_call.1} parent=59 // pred_check_branch
        %1238 = sbr.rel (%p1236) target = $region80
      $region79: #{tpu_custom_call.1} parent=59 // pred_region
        %v1239 = vld [vmem:[#allocation8] sm:$0xff]
        %v1240 = vld [vmem:[#allocation8 + $0x8] sm:$0xff]
        %v1241 = vld [vmem:[#allocation8 + $0x10] sm:$0xff]
        %v1242 = vld [vmem:[#allocation8 + $0x18] sm:$0xff]
        %v1243 = vld [vmem:[%s2] sm:$0xff]
        %v1244 = vld [vmem:[%s2 + $0x8] sm:$0xff]
        %v1245 = vld [vmem:[%s2 + $0x10] sm:$0xff]
        %v1246 = vld [vmem:[%s2 + $0x18] sm:$0xff]
        %vm1247 = vcmask 261120
        %v1249 = vsel %vm1247, %v1243, 0
        %v1252 = vsel %vm1247, %v1244, 0
        %v1255 = vsel %vm1247, %v1245, 0
        %v1258 = vsel %vm1247, %v1246, 0
        %1260 = vmatprep.subr.mxu0 0.0
        %1261 = vmatpush1.msra.mxu0 %v1239
        %1262 = vmatprep.subr.mxu0 0.0
        %1263 = vmatpush1.msra.mxu0 %v1240
        %1264 = vmatprep.subr.mxu0 0.0
        %1265 = vmatpush1.msra.mxu0 %v1241
        %1266 = vmatprep.subr.mxu0 0.0
        %1267 = vmatpush1.msra.mxu0 %v1242
        %1268 = vmatprep.subr.mxu0 0.0
        %1269 = vmatpush1.msra.mxu0 0.0
        %1270 = vmatprep.subr.mxu0 0.0
        %1271 = vmatpush1.msra.mxu0 0.0
        %1272 = vmatprep.subr.mxu0 0.0
        %1273 = vmatpush1.msra.mxu0 0.0
        %1274 = vmatprep.subr.mxu0 0.0
        %1275 = vmatpush1.msra.mxu0 0.0
        %1276 = vmatprep.subr.mxu0 0.0
        %1277 = vmatpush1.msra.mxu0 0.0
        %1278 = vmatprep.subr.mxu0 0.0
        %1279 = vmatpush1.msra.mxu0 0.0
        %1280 = vmatprep.subr.mxu0 0.0
        %1281 = vmatpush1.msra.mxu0 0.0
        %1282 = vmatprep.subr.mxu0 0.0
        %1283 = vmatpush1.msra.mxu0 0.0
        %1284 = vmatprep.subr.mxu0 0.0
        %1285 = vmatpush1.msra.mxu0 0.0
        %1286 = vmatprep.subr.mxu0 0.0
        %1287 = vmatpush1.msra.mxu0 0.0
        %1288 = vmatprep.subr.mxu0 0.0
        %1289 = vmatpush1.msra.mxu0 0.0
        %1290 = vmatprep.subr.mxu0 0.0
        %1291 = vmatpush1.msra.mxu0 0.0
        %1292 = vmatprep.subr.mxu0 0.0
        %1293 = vmatpush1.msra.mxu0 0.0
        %1294 = vmatprep.subr.mxu0 0.0
        %1295 = vmatpush1.msra.mxu0 0.0
        %1296 = vmatprep.subr.mxu0 0.0
        %1297 = vmatpush1.msra.mxu0 0.0
        %1298 = vmatprep.subr.mxu0 0.0
        %1299 = vmatpush1.msra.mxu0 0.0
        %1300 = vmatprep.subr.mxu0 0.0
        %1301 = vmatpush1.msra.mxu0 0.0
        %1302 = vmatprep.subr.mxu0 0.0
        %1303 = vmatpush1.msra.mxu0 0.0
        %1304 = vmatprep.subr.mxu0 0.0
        %1305 = vmatpush1.msra.mxu0 0.0
        %1306 = vmatprep.subr.mxu0 0.0
        %1307 = vmatpush1.msra.mxu0 0.0
        %1308 = vmatprep.subr.mxu0 0.0
        %1309 = vmatpush1.msra.mxu0 0.0
        %1310 = vmatprep.subr.mxu0 0.0
        %1311 = vmatpush1.msra.mxu0 0.0
        %1312 = vmatprep.subr.mxu0 0.0
        %1313 = vmatpush1.msra.mxu0 0.0
        %1314 = vmatprep.subr.mxu0 0.0
        %1315 = vmatpush1.msra.mxu0 0.0
        %1316 = vmatprep.subr.mxu0 0.0
        %1317 = vmatpush1.msra.mxu0 0.0
        %1318 = vmatprep.subr.mxu0 0.0
        %1319 = vmatpush1.msra.mxu0 0.0
        %1320 = vmatprep.subr.mxu0 0.0
        %1321 = vmatpush1.msra.mxu0 0.0
        %1322 = vmatprep.subr.mxu0 0.0
        %1323 = vmatpush1.msra.mxu0 0.0
        %1324 = vmatprep.mubr.f32.mxu0 0.0
        %1325 = vmatmul.mubr.f32.gmra.mrb[0].mxu0 %v1249
        %v1326 = vpop.f32.mrb[0].mxu0
        %v1327 = vadd.f32 0.0, %v1326
        %v1328 = vpop.f32.mrb[0].mxu0
        %1329 = vmatprep.mubr.f32.mxu0 0.0
        %1330 = vmatmul.mubr.f32.gmra.mrb[0].mxu0 %v1252
        %v1331 = vpop.f32.mrb[0].mxu0
        %v1332 = vadd.f32 0.0, %v1331
        %v1333 = vpop.f32.mrb[0].mxu0
        %1334 = vmatprep.mubr.f32.mxu0 0.0
        %1335 = vmatmul.mubr.f32.gmra.mrb[0].mxu0 %v1255
        %v1336 = vpop.f32.mrb[0].mxu0
        %v1337 = vadd.f32 0.0, %v1336
        %v1338 = vpop.f32.mrb[0].mxu0
        %1339 = vmatprep.mubr.f32.mxu0 0.0
        %1340 = vmatmul.mubr.f32.gmra.mrb[0].mxu0 %v1258
        %v1341 = vpop.f32.mrb[0].mxu0
        %v1342 = vadd.f32 0.0, %v1341
        %v1343 = vpop.f32.mrb[0].mxu0
        %1344 = vdwg.mxu0
        %p1345 = scmp.eq.s32.totalorder %s32, 1
        // Predicated region
        $region81: #{tpu_custom_call.1} parent=79 // pred_check
          %p1346 = pneg %p1345
        $region82: #{tpu_custom_call.1} parent=79 // pred_check_branch
          %1348 = sbr.rel (%p1346) target = $region84
        $region83: #{tpu_custom_call.1} parent=79 // pred_region
          %v1349 = vmul.f32 %v1327, %v531
          %v1350 = vmul.f32 %v1332, %v531
          %v1351 = vmul.f32 %v1337, %v531
          %v1352 = vmul.f32 %v1342, %v531
          %v1353 = vld [vmem:[#allocation3] sm:$0xff]
          %v1354 = vld [vmem:[#allocation3 + $0x8] sm:$0xff]
          %v1355 = vld [vmem:[#allocation3 + $0x10] sm:$0xff]
          %v1356 = vld [vmem:[#allocation3 + $0x18] sm:$0xff]
          %1357 = vadd.xlane.f32.xlu0 %v1349
          %v1358 = vpop.xlane.xlu0 %1357
          %1359 = vadd.xlane.f32.xlu0 %v1350
          %v1360 = vpop.xlane.xlu0 %1359
          %1361 = vadd.xlane.f32.xlu0 %v1351
          %v1362 = vpop.xlane.xlu0 %1361
          %1363 = vadd.xlane.f32.xlu0 %v1352
          %v1364 = vpop.xlane.xlu0 %1363
          %v1365 = vadd.f32 %v1353, %v1358
          %v1366 = vadd.f32 %v1354, %v1360
          %v1367 = vadd.f32 %v1355, %v1362
          %v1368 = vadd.f32 %v1356, %v1364
          %vm1369 = vcmask 7168
          %1370 = vst.msk [vmem:[#allocation3] sm:$0xff] %vm1369, %v1365
          %1371 = vst.msk [vmem:[#allocation3 + $0x8] sm:$0xff] %vm1369, %v1366
          %1372 = vst.msk [vmem:[#allocation3 + $0x10] sm:$0xff] %vm1369, %v1367
          %1373 = vst.msk [vmem:[#allocation3 + $0x18] sm:$0xff] %vm1369, %v1368
          %v1374 = vld [vmem:[#allocation6] sm:$0xff]
          %v1375 = vld [vmem:[#allocation6 + $0x8] sm:$0xff]
          %v1376 = vld [vmem:[#allocation6 + $0x10] sm:$0xff]
          %v1377 = vld [vmem:[#allocation6 + $0x18] sm:$0xff]
          %v1378 = vmul.f32 %v1349, %v1349
          %v1379 = vmul.f32 %v1350, %v1350
          %v1380 = vmul.f32 %v1351, %v1351
          %v1381 = vmul.f32 %v1352, %v1352
          %1382 = vadd.xlane.f32.xlu0 %v1378
          %v1383 = vpop.xlane.xlu0 %1382
          %1384 = vadd.xlane.f32.xlu0 %v1379
          %v1385 = vpop.xlane.xlu0 %1384
          %1386 = vadd.xlane.f32.xlu0 %v1380
          %v1387 = vpop.xlane.xlu0 %1386
          %1388 = vadd.xlane.f32.xlu0 %v1381
          %v1389 = vpop.xlane.xlu0 %1388
          %v1390 = vadd.f32 %v1374, %v1383
          %v1391 = vadd.f32 %v1375, %v1385
          %v1392 = vadd.f32 %v1376, %v1387
          %v1393 = vadd.f32 %v1377, %v1389
          %1394 = vst.msk [vmem:[#allocation6] sm:$0xff] %vm1369, %v1390
          %1395 = vst.msk [vmem:[#allocation6 + $0x8] sm:$0xff] %vm1369, %v1391
          %1396 = vst.msk [vmem:[#allocation6 + $0x10] sm:$0xff] %vm1369, %v1392
          %1397 = vst.msk [vmem:[#allocation6 + $0x18] sm:$0xff] %vm1369, %v1393
          // Predicated region
          $region85: #{tpu_custom_call.1} parent=83 // pred_check
            _
          $region86: #{tpu_custom_call.1} parent=83 // pred_check_branch
            %1399 = sbr.rel (%p501) target = $region88
          $region87: #{tpu_custom_call.1} parent=83 // pred_region
            %v1400 = vld [vmem:[#allocation3] sm:$0xff]
            %v1401 = vld [vmem:[#allocation3 + $0x8] sm:$0xff]
            %v1402 = vld [vmem:[#allocation3 + $0x10] sm:$0xff]
            %v1403 = vld [vmem:[#allocation3 + $0x18] sm:$0xff]
            %v1404 = vmul.f32 %v1400, 0.03125
            %v1405 = vmul.f32 %v1401, 0.03125
            %v1406 = vmul.f32 %v1402, 0.03125
            %v1407 = vmul.f32 %v1403, 0.03125
            %v1408 = vld [vmem:[#allocation6] sm:$0xff]
            %v1409 = vld [vmem:[#allocation6 + $0x8] sm:$0xff]
            %v1410 = vld [vmem:[#allocation6 + $0x10] sm:$0xff]
            %v1411 = vld [vmem:[#allocation6 + $0x18] sm:$0xff]
            %v1412 = vmul.f32 %v1408, 0.03125
            %v1413 = vmul.f32 %v1409, 0.03125
            %v1414 = vmul.f32 %v1410, 0.03125
            %v1415 = vmul.f32 %v1411, 0.03125
            %v1416 = vmul.f32 %v1404, %v1404
            %v1417 = vmul.f32 %v1405, %v1405
            %v1418 = vmul.f32 %v1406, %v1406
            %v1419 = vmul.f32 %v1407, %v1407
            %v1420 = vsub.f32 %v1412, %v1416
            %v1421 = vsub.f32 %v1413, %v1417
            %v1422 = vsub.f32 %v1414, %v1418
            %v1423 = vsub.f32 %v1415, %v1419
            %v1424 = vmax.f32 %v1420, 0.0
            %v1425 = vmax.f32 %v1421, 0.0
            %v1426 = vmax.f32 %v1422, 0.0
            %v1427 = vmax.f32 %v1423, 0.0
            %v1428 = vld [vmem:[%s5] sm:$0xff]
            %v1429 = vld [vmem:[%s5 + $0x8] sm:$0xff]
            %v1430 = vld [vmem:[%s5 + $0x10] sm:$0xff]
            %v1431 = vld [vmem:[%s5 + $0x18] sm:$0xff]
            %v1432 = vadd.f32 %v1424, 1e-05
            %v1433 = vadd.f32 %v1425, 1e-05
            %v1434 = vadd.f32 %v1426, 1e-05
            %v1435 = vadd.f32 %v1427, 1e-05
            %v1436 = vrsqrt.pop %v1432
            %v1437 = vrsqrt.pop %v1433
            %v1438 = vrsqrt.pop %v1434
            %v1439 = vrsqrt.pop %v1435
            %v1440 = vmul.f32 %v1428, %v1436
            %v1441 = vmul.f32 %v1429, %v1437
            %v1442 = vmul.f32 %v1430, %v1438
            %v1443 = vmul.f32 %v1431, %v1439
            %1444 = vst.msk [vmem:[%s11] sm:$0xff] %vm1369, %v1440
            %1445 = vst.msk [vmem:[%s11 + $0x8] sm:$0xff] %vm1369, %v1441
            %1446 = vst.msk [vmem:[%s11 + $0x10] sm:$0xff] %vm1369, %v1442
            %1447 = vst.msk [vmem:[%s11 + $0x18] sm:$0xff] %vm1369, %v1443
            %v1448 = vld [vmem:[%s8] sm:$0xff]
            %v1449 = vld [vmem:[%s8 + $0x8] sm:$0xff]
            %v1450 = vld [vmem:[%s8 + $0x10] sm:$0xff]
            %v1451 = vld [vmem:[%s8 + $0x18] sm:$0xff]
            %v1452 = vmul.f32 %v1404, %v1440
            %v1453 = vmul.f32 %v1405, %v1441
            %v1454 = vmul.f32 %v1406, %v1442
            %v1455 = vmul.f32 %v1407, %v1443
            %v1456 = vsub.f32 %v1448, %v1452
            %v1457 = vsub.f32 %v1449, %v1453
            %v1458 = vsub.f32 %v1450, %v1454
            %v1459 = vsub.f32 %v1451, %v1455
            %1460 = vst.msk [vmem:[%s14] sm:$0xff] %vm1369, %v1456
            %1461 = vst.msk [vmem:[%s14 + $0x8] sm:$0xff] %vm1369, %v1457
            %1462 = vst.msk [vmem:[%s14 + $0x10] sm:$0xff] %vm1369, %v1458
            %1463 = vst.msk [vmem:[%s14 + $0x18] sm:$0xff] %vm1369, %v1459
          $region88: #{tpu_custom_call.1} parent=83 // pred_fallthru
            _
        $region84: #{tpu_custom_call.1} parent=79 // pred_fallthru
          _
        %p1464 = scmp.gt.s32.totalorder %s32, 1
        // Predicated region
        $region89: #{tpu_custom_call.1} parent=79 // pred_check
          %p1465 = pneg %p1464
        $region90: #{tpu_custom_call.1} parent=79 // pred_check_branch
          %1467 = sbr.rel (%p1465) target = $region92
        $region91: #{tpu_custom_call.1} parent=79 // pred_region
          %v1468 = vld [vmem:[%s11] sm:$0xff]
          %v1469 = vld [vmem:[%s11 + $0x8] sm:$0xff]
          %v1470 = vld [vmem:[%s11 + $0x10] sm:$0xff]
          %v1471 = vld [vmem:[%s11 + $0x18] sm:$0xff]
          %1473 = vset.pattern.permute.xlu0 0
          %1474 = vperm.xlu0 %1473, %v1468
          %v1475 = vpop.permute.xlu0 %1474
          %1478 = vset.pattern.permute.xlu0 0
          %1479 = vperm.xlu0 %1478, %v1469
          %v1480 = vpop.permute.xlu0 %1479
          %1483 = vset.pattern.permute.xlu0 0
          %1484 = vperm.xlu0 %1483, %v1470
          %v1485 = vpop.permute.xlu0 %1484
          %1488 = vset.pattern.permute.xlu0 0
          %1489 = vperm.xlu0 %1488, %v1471
          %v1490 = vpop.permute.xlu0 %1489
          %v1492 = vmul.f32 %v1327, %v1475
          %v1493 = vmul.f32 %v1332, %v1480
          %v1494 = vmul.f32 %v1337, %v1485
          %v1495 = vmul.f32 %v1342, %v1490
          %v1496 = vld [vmem:[%s14] sm:$0xff]
          %v1497 = vld [vmem:[%s14 + $0x8] sm:$0xff]
          %v1498 = vld [vmem:[%s14 + $0x10] sm:$0xff]
          %v1499 = vld [vmem:[%s14 + $0x18] sm:$0xff]
          %1501 = vset.pattern.permute.xlu0 0
          %1502 = vperm.xlu0 %1501, %v1496
          %v1503 = vpop.permute.xlu0 %1502
          %1506 = vset.pattern.permute.xlu0 0
          %1507 = vperm.xlu0 %1506, %v1497
          %v1508 = vpop.permute.xlu0 %1507
          %1511 = vset.pattern.permute.xlu0 0
          %1512 = vperm.xlu0 %1511, %v1498
          %v1513 = vpop.permute.xlu0 %1512
          %1516 = vset.pattern.permute.xlu0 0
          %1517 = vperm.xlu0 %1516, %v1499
          %v1518 = vpop.permute.xlu0 %1517
          %v1520 = vadd.f32 %v1492, %v1503
          %v1521 = vadd.f32 %v1493, %v1508
          %v1522 = vadd.f32 %v1494, %v1513
          %v1523 = vadd.f32 %v1495, %v1518
          %v1524 = vand.u32 2147483647, %v1520
          %vm1525 = vcmp.le.f32.partialorder %v1524, 0.7853982
          %vm1526 = vcmp.lt.s32.totalorder %v1520, 0
          %v1527 = vand.u32 %v1520, 2139095040
          %v1528 = vshrl.u32 %v1527, 23
          %v1529 = vsub.s32 %v1528, 127
          %v1530 = vand.u32 2147483647, %v1520
          %v1531 = vand.u32 %v1530, 8388607
          %v1532 = vor.u32 %v1531, 8388608
          %v1533 = vsub.s32 0, %v1532
          %v1534 = vadd.s32 %v1529, 1
          %vm1535 = vcmp.gt.s32.totalorder %v1534, 0
          %v1536 = vsel %vm1535, %v1534, 0
          %v1537 = vshrl.u32 %v1536, 5
          %v1538 = vand.u32 %v1536, 31
          %v1539 = vsub.s32 32, %v1538
          %v1540 = vshrl.u32 683565275, %v1539
          %v1541 = vshll.u32 683565275, %v1538
          %v1542 = vshrl.u32 2475754826, %v1539
          %v1543 = vor.u32 %v1541, %v1542
          %v1544 = vshll.u32 2475754826, %v1538
          %v1545 = vshrl.u32 2131351028, %v1539
          %v1546 = vor.u32 %v1544, %v1545
          %v1547 = vshll.u32 2131351028, %v1538
          %v1548 = vshrl.u32 2102212464, %v1539
          %v1549 = vor.u32 %v1547, %v1548
          %v1550 = vshll.u32 2102212464, %v1538
          %v1551 = vshrl.u32 920167782, %v1539
          %v1552 = vor.u32 %v1550, %v1551
          %v1553 = vshll.u32 920167782, %v1538
          %v1554 = vshrl.u32 1326507024, %v1539
          %v1555 = vor.u32 %v1553, %v1554
          %vm1556 = vcmp.lt.s32.totalorder %v1537, 1
          %vm1557 = vcmp.lt.s32.totalorder %v1537, 2
          %vm1558 = vcmp.lt.s32.totalorder %v1537, 3
          %vm1559 = vcmp.lt.s32.totalorder %v1537, 4
          %v1560 = vsel %vm1556, %v1540, %v1543
          %v1561 = vsel %vm1559, %v1549, 2102212464
          %v1562 = vsel %vm1558, %v1546, %v1561
          %v1563 = vsel %vm1557, %v1560, %v1562
          %v1564 = vsel %vm1556, %v1543, %v1546
          %v1565 = vsel %vm1559, %v1552, 920167782
          %v1566 = vsel %vm1558, %v1549, %v1565
          %v1567 = vsel %vm1557, %v1564, %v1566
          %v1568 = vsel %vm1556, %v1546, %v1549
          %v1569 = vsel %vm1559, %v1555, 1326507024
          %v1570 = vsel %vm1558, %v1552, %v1569
          %v1571 = vsel %vm1557, %v1568, %v1570
          %v1572 = vshll.u32 %v1532, 8
          %v1573 = vmul.u32.u64.compose %v1572, %v1571
          %v1574 = vextract.low.u32 %v1573
          %v1575 = vextract.high.u32 %v1573
          %v1576 = vmul.u32.u64.compose %v1572, %v1567
          %v1577 = vextract.low.u32 %v1576
          %v1578 = vextract.high.u32 %v1576
          %v1579 = vmul.u32 %v1572, %v1563
          %v1580 = vadd.s32 %v1575, %v1577
          %vm1581 = vc.u32 %v1575, %v1577
          %v1582 = vadd.s32 %v1578, 1
          %v1583 = vsel %vm1581, %v1582, %v1578
          %v1584 = vadd.s32 %v1579, %v1583
          %v1585 = vadd.s32 %v1584, 536870912
          %v1586 = vshrl.u32 %v1585, 30
          %v1587 = vshll.u32 %v1586, 30
          %v1588 = vsub.s32 %v1584, %v1587
          %vm1589 = vcmp.lt.s32.totalorder %v1588, 0
          %v1590 = vsub.s32 0, %v1588
          %v1591 = vsel %vm1589, %v1590, %v1588
          %v1592 = vclz %v1591
          %v1593 = vsub.s32 %v1592, 2
          %vm1594 = vcmp.gt.s32.totalorder 0, %v1593
          %v1595 = vsel %vm1594, 0, %v1593
          %v1596 = vsub.s32 32, %v1595
          %v1597 = vshll.u32 %v1588, %v1595
          %v1598 = vshrl.u32 %v1580, %v1596
          %v1599 = vor.u32 %v1597, %v1598
          %v1600 = vsub.s32 4294967266, %v1595
          %v1601 = vadd.s32 %v1600, 127
          %v1602 = vshll.u32 %v1601, 23
          %v1603 = vor.u32 4788187, %v1602
          %v1604 = vand.u32 2147483647, %v1603
          %v1606 = vcvt.s32.f32 %v1599
          %v1607 = vmul.f32 %v1606, %v1604
          %v1608 = vxor.u32 %v1607, 2147483648
          %v1609 = vsel %vm1526, %v1608, %v1607
          %v1610 = vsub.s32 4, %v1586
          %v1611 = vsel %vm1526, %v1610, %v1586
          %v1612 = vsel %vm1525, %v1520, %v1609
          %v1613 = vsel %vm1525, 0, %v1611
          %v1614 = vcosq.f32.pop %v1612
          %v1615 = vsinq.f32.pop %v1612
          %vm1616 = vweird.f32 %v1520
          %v1617 = vadd.s32 %v1613, 3
          %v1618 = vand.u32 %v1617, 3
          %vm1619 = vcmp.lt.s32.totalorder %v1618, 2
          %vm1620 = vcmp.eq.s32.totalorder %v1618, 0
          %v1621 = vxor.u32 %v1615, 2147483648
          %v1622 = vsel %vm1620, %v1614, %v1621
          %vm1623 = vcmp.eq.s32.totalorder %v1618, 2
          %v1624 = vxor.u32 %v1614, 2147483648
          %v1625 = vsel %vm1623, %v1624, %v1615
          %v1626 = vsel %vm1619, %v1622, %v1625
          %v1627 = vsel %vm1616, nan, %v1626
          %v1628 = vand.u32 2147483647, %v1521
          %vm1629 = vcmp.le.f32.partialorder %v1628, 0.7853982
          %vm1630 = vcmp.lt.s32.totalorder %v1521, 0
          %v1631 = vand.u32 %v1521, 2139095040
          %v1632 = vshrl.u32 %v1631, 23
          %v1633 = vsub.s32 %v1632, 127
          %v1634 = vand.u32 2147483647, %v1521
          %v1635 = vand.u32 %v1634, 8388607
          %v1636 = vor.u32 %v1635, 8388608
          %v1637 = vsub.s32 0, %v1636
          %v1638 = vadd.s32 %v1633, 1
          %vm1639 = vcmp.gt.s32.totalorder %v1638, 0
          %v1640 = vsel %vm1639, %v1638, 0
          %v1641 = vshrl.u32 %v1640, 5
          %v1642 = vand.u32 %v1640, 31
          %v1643 = vsub.s32 32, %v1642
          %v1644 = vshrl.u32 683565275, %v1643
          %v1645 = vshll.u32 683565275, %v1642
          %v1646 = vshrl.u32 2475754826, %v1643
          %v1647 = vor.u32 %v1645, %v1646
          %v1648 = vshll.u32 2475754826, %v1642
          %v1649 = vshrl.u32 2131351028, %v1643
          %v1650 = vor.u32 %v1648, %v1649
          %v1651 = vshll.u32 2131351028, %v1642
          %v1652 = vshrl.u32 2102212464, %v1643
          %v1653 = vor.u32 %v1651, %v1652
          %v1654 = vshll.u32 2102212464, %v1642
          %v1655 = vshrl.u32 920167782, %v1643
          %v1656 = vor.u32 %v1654, %v1655
          %v1657 = vshll.u32 920167782, %v1642
          %v1658 = vshrl.u32 1326507024, %v1643
          %v1659 = vor.u32 %v1657, %v1658
          %vm1660 = vcmp.lt.s32.totalorder %v1641, 1
          %vm1661 = vcmp.lt.s32.totalorder %v1641, 2
          %vm1662 = vcmp.lt.s32.totalorder %v1641, 3
          %vm1663 = vcmp.lt.s32.totalorder %v1641, 4
          %v1664 = vsel %vm1660, %v1644, %v1647
          %v1665 = vsel %vm1663, %v1653, 2102212464
          %v1666 = vsel %vm1662, %v1650, %v1665
          %v1667 = vsel %vm1661, %v1664, %v1666
          %v1668 = vsel %vm1660, %v1647, %v1650
          %v1669 = vsel %vm1663, %v1656, 920167782
          %v1670 = vsel %vm1662, %v1653, %v1669
          %v1671 = vsel %vm1661, %v1668, %v1670
          %v1672 = vsel %vm1660, %v1650, %v1653
          %v1673 = vsel %vm1663, %v1659, 1326507024
          %v1674 = vsel %vm1662, %v1656, %v1673
          %v1675 = vsel %vm1661, %v1672, %v1674
          %v1676 = vshll.u32 %v1636, 8
          %v1677 = vmul.u32.u64.compose %v1676, %v1675
          %v1678 = vextract.low.u32 %v1677
          %v1679 = vextract.high.u32 %v1677
          %v1680 = vmul.u32.u64.compose %v1676, %v1671
          %v1681 = vextract.low.u32 %v1680
          %v1682 = vextract.high.u32 %v1680
          %v1683 = vmul.u32 %v1676, %v1667
          %v1684 = vadd.s32 %v1679, %v1681
          %vm1685 = vc.u32 %v1679, %v1681
          %v1686 = vadd.s32 %v1682, 1
          %v1687 = vsel %vm1685, %v1686, %v1682
          %v1688 = vadd.s32 %v1683, %v1687
          %v1689 = vadd.s32 %v1688, 536870912
          %v1690 = vshrl.u32 %v1689, 30
          %v1691 = vshll.u32 %v1690, 30
          %v1692 = vsub.s32 %v1688, %v1691
          %vm1693 = vcmp.lt.s32.totalorder %v1692, 0
          %v1694 = vsub.s32 0, %v1692
          %v1695 = vsel %vm1693, %v1694, %v1692
          %v1696 = vclz %v1695
          %v1697 = vsub.s32 %v1696, 2
          %vm1698 = vcmp.gt.s32.totalorder 0, %v1697
          %v1699 = vsel %vm1698, 0, %v1697
          %v1700 = vsub.s32 32, %v1699
          %v1701 = vshll.u32 %v1692, %v1699
          %v1702 = vshrl.u32 %v1684, %v1700
          %v1703 = vor.u32 %v1701, %v1702
          %v1704 = vsub.s32 4294967266, %v1699
          %v1705 = vadd.s32 %v1704, 127
          %v1706 = vshll.u32 %v1705, 23
          %v1707 = vor.u32 4788187, %v1706
          %v1708 = vand.u32 2147483647, %v1707
          %v1710 = vcvt.s32.f32 %v1703
          %v1711 = vmul.f32 %v1710, %v1708
          %v1712 = vxor.u32 %v1711, 2147483648
          %v1713 = vsel %vm1630, %v1712, %v1711
          %v1714 = vsub.s32 4, %v1690
          %v1715 = vsel %vm1630, %v1714, %v1690
          %v1716 = vsel %vm1629, %v1521, %v1713
          %v1717 = vsel %vm1629, 0, %v1715
          %v1718 = vcosq.f32.pop %v1716
          %v1719 = vsinq.f32.pop %v1716
          %vm1720 = vweird.f32 %v1521
          %v1721 = vadd.s32 %v1717, 3
          %v1722 = vand.u32 %v1721, 3
          %vm1723 = vcmp.lt.s32.totalorder %v1722, 2
          %vm1724 = vcmp.eq.s32.totalorder %v1722, 0
          %v1725 = vxor.u32 %v1719, 2147483648
          %v1726 = vsel %vm1724, %v1718, %v1725
          %vm1727 = vcmp.eq.s32.totalorder %v1722, 2
          %v1728 = vxor.u32 %v1718, 2147483648
          %v1729 = vsel %vm1727, %v1728, %v1719
          %v1730 = vsel %vm1723, %v1726, %v1729
          %v1731 = vsel %vm1720, nan, %v1730
          %v1732 = vand.u32 2147483647, %v1522
          %vm1733 = vcmp.le.f32.partialorder %v1732, 0.7853982
          %vm1734 = vcmp.lt.s32.totalorder %v1522, 0
          %v1735 = vand.u32 %v1522, 2139095040
          %v1736 = vshrl.u32 %v1735, 23
          %v1737 = vsub.s32 %v1736, 127
          %v1738 = vand.u32 2147483647, %v1522
          %v1739 = vand.u32 %v1738, 8388607
          %v1740 = vor.u32 %v1739, 8388608
          %v1741 = vsub.s32 0, %v1740
          %v1742 = vadd.s32 %v1737, 1
          %vm1743 = vcmp.gt.s32.totalorder %v1742, 0
          %v1744 = vsel %vm1743, %v1742, 0
          %v1745 = vshrl.u32 %v1744, 5
          %v1746 = vand.u32 %v1744, 31
          %v1747 = vsub.s32 32, %v1746
          %v1748 = vshrl.u32 683565275, %v1747
          %v1749 = vshll.u32 683565275, %v1746
          %v1750 = vshrl.u32 2475754826, %v1747
          %v1751 = vor.u32 %v1749, %v1750
          %v1752 = vshll.u32 2475754826, %v1746
          %v1753 = vshrl.u32 2131351028, %v1747
          %v1754 = vor.u32 %v1752, %v1753
          %v1755 = vshll.u32 2131351028, %v1746
          %v1756 = vshrl.u32 2102212464, %v1747
          %v1757 = vor.u32 %v1755, %v1756
          %v1758 = vshll.u32 2102212464, %v1746
          %v1759 = vshrl.u32 920167782, %v1747
          %v1760 = vor.u32 %v1758, %v1759
          %v1761 = vshll.u32 920167782, %v1746
          %v1762 = vshrl.u32 1326507024, %v1747
          %v1763 = vor.u32 %v1761, %v1762
          %vm1764 = vcmp.lt.s32.totalorder %v1745, 1
          %vm1765 = vcmp.lt.s32.totalorder %v1745, 2
          %vm1766 = vcmp.lt.s32.totalorder %v1745, 3
          %vm1767 = vcmp.lt.s32.totalorder %v1745, 4
          %v1768 = vsel %vm1764, %v1748, %v1751
          %v1769 = vsel %vm1767, %v1757, 2102212464
          %v1770 = vsel %vm1766, %v1754, %v1769
          %v1771 = vsel %vm1765, %v1768, %v1770
          %v1772 = vsel %vm1764, %v1751, %v1754
          %v1773 = vsel %vm1767, %v1760, 920167782
          %v1774 = vsel %vm1766, %v1757, %v1773
          %v1775 = vsel %vm1765, %v1772, %v1774
          %v1776 = vsel %vm1764, %v1754, %v1757
          %v1777 = vsel %vm1767, %v1763, 1326507024
          %v1778 = vsel %vm1766, %v1760, %v1777
          %v1779 = vsel %vm1765, %v1776, %v1778
          %v1780 = vshll.u32 %v1740, 8
          %v1781 = vmul.u32.u64.compose %v1780, %v1779
          %v1782 = vextract.low.u32 %v1781
          %v1783 = vextract.high.u32 %v1781
          %v1784 = vmul.u32.u64.compose %v1780, %v1775
          %v1785 = vextract.low.u32 %v1784
          %v1786 = vextract.high.u32 %v1784
          %v1787 = vmul.u32 %v1780, %v1771
          %v1788 = vadd.s32 %v1783, %v1785
          %vm1789 = vc.u32 %v1783, %v1785
          %v1790 = vadd.s32 %v1786, 1
          %v1791 = vsel %vm1789, %v1790, %v1786
          %v1792 = vadd.s32 %v1787, %v1791
          %v1793 = vadd.s32 %v1792, 536870912
          %v1794 = vshrl.u32 %v1793, 30
          %v1795 = vshll.u32 %v1794, 30
          %v1796 = vsub.s32 %v1792, %v1795
          %vm1797 = vcmp.lt.s32.totalorder %v1796, 0
          %v1798 = vsub.s32 0, %v1796
          %v1799 = vsel %vm1797, %v1798, %v1796
          %v1800 = vclz %v1799
          %v1801 = vsub.s32 %v1800, 2
          %vm1802 = vcmp.gt.s32.totalorder 0, %v1801
          %v1803 = vsel %vm1802, 0, %v1801
          %v1804 = vsub.s32 32, %v1803
          %v1805 = vshll.u32 %v1796, %v1803
          %v1806 = vshrl.u32 %v1788, %v1804
          %v1807 = vor.u32 %v1805, %v1806
          %v1808 = vsub.s32 4294967266, %v1803
          %v1809 = vadd.s32 %v1808, 127
          %v1810 = vshll.u32 %v1809, 23
          %v1811 = vor.u32 4788187, %v1810
          %v1812 = vand.u32 2147483647, %v1811
          %v1814 = vcvt.s32.f32 %v1807
          %v1815 = vmul.f32 %v1814, %v1812
          %v1816 = vxor.u32 %v1815, 2147483648
          %v1817 = vsel %vm1734, %v1816, %v1815
          %v1818 = vsub.s32 4, %v1794
          %v1819 = vsel %vm1734, %v1818, %v1794
          %v1820 = vsel %vm1733, %v1522, %v1817
          %v1821 = vsel %vm1733, 0, %v1819
          %v1822 = vcosq.f32.pop %v1820
          %v1823 = vsinq.f32.pop %v1820
          %vm1824 = vweird.f32 %v1522
          %v1825 = vadd.s32 %v1821, 3
          %v1826 = vand.u32 %v1825, 3
          %vm1827 = vcmp.lt.s32.totalorder %v1826, 2
          %vm1828 = vcmp.eq.s32.totalorder %v1826, 0
          %v1829 = vxor.u32 %v1823, 2147483648
          %v1830 = vsel %vm1828, %v1822, %v1829
          %vm1831 = vcmp.eq.s32.totalorder %v1826, 2
          %v1832 = vxor.u32 %v1822, 2147483648
          %v1833 = vsel %vm1831, %v1832, %v1823
          %v1834 = vsel %vm1827, %v1830, %v1833
          %v1835 = vsel %vm1824, nan, %v1834
          %v1836 = vand.u32 2147483647, %v1523
          %vm1837 = vcmp.le.f32.partialorder %v1836, 0.7853982
          %vm1838 = vcmp.lt.s32.totalorder %v1523, 0
          %v1839 = vand.u32 %v1523, 2139095040
          %v1840 = vshrl.u32 %v1839, 23
          %v1841 = vsub.s32 %v1840, 127
          %v1842 = vand.u32 2147483647, %v1523
          %v1843 = vand.u32 %v1842, 8388607
          %v1844 = vor.u32 %v1843, 8388608
          %v1845 = vsub.s32 0, %v1844
          %v1846 = vadd.s32 %v1841, 1
          %vm1847 = vcmp.gt.s32.totalorder %v1846, 0
          %v1848 = vsel %vm1847, %v1846, 0
          %v1849 = vshrl.u32 %v1848, 5
          %v1850 = vand.u32 %v1848, 31
          %v1851 = vsub.s32 32, %v1850
          %v1852 = vshrl.u32 683565275, %v1851
          %v1853 = vshll.u32 683565275, %v1850
          %v1854 = vshrl.u32 2475754826, %v1851
          %v1855 = vor.u32 %v1853, %v1854
          %v1856 = vshll.u32 2475754826, %v1850
          %v1857 = vshrl.u32 2131351028, %v1851
          %v1858 = vor.u32 %v1856, %v1857
          %v1859 = vshll.u32 2131351028, %v1850
          %v1860 = vshrl.u32 2102212464, %v1851
          %v1861 = vor.u32 %v1859, %v1860
          %v1862 = vshll.u32 2102212464, %v1850
          %v1863 = vshrl.u32 920167782, %v1851
          %v1864 = vor.u32 %v1862, %v1863
          %v1865 = vshll.u32 920167782, %v1850
          %v1866 = vshrl.u32 1326507024, %v1851
          %v1867 = vor.u32 %v1865, %v1866
          %vm1868 = vcmp.lt.s32.totalorder %v1849, 1
          %vm1869 = vcmp.lt.s32.totalorder %v1849, 2
          %vm1870 = vcmp.lt.s32.totalorder %v1849, 3
          %vm1871 = vcmp.lt.s32.totalorder %v1849, 4
          %v1872 = vsel %vm1868, %v1852, %v1855
          %v1873 = vsel %vm1871, %v1861, 2102212464
          %v1874 = vsel %vm1870, %v1858, %v1873
          %v1875 = vsel %vm1869, %v1872, %v1874
          %v1876 = vsel %vm1868, %v1855, %v1858
          %v1877 = vsel %vm1871, %v1864, 920167782
          %v1878 = vsel %vm1870, %v1861, %v1877
          %v1879 = vsel %vm1869, %v1876, %v1878
          %v1880 = vsel %vm1868, %v1858, %v1861
          %v1881 = vsel %vm1871, %v1867, 1326507024
          %v1882 = vsel %vm1870, %v1864, %v1881
          %v1883 = vsel %vm1869, %v1880, %v1882
          %v1884 = vshll.u32 %v1844, 8
          %v1885 = vmul.u32.u64.compose %v1884, %v1883
          %v1886 = vextract.low.u32 %v1885
          %v1887 = vextract.high.u32 %v1885
          %v1888 = vmul.u32.u64.compose %v1884, %v1879
          %v1889 = vextract.low.u32 %v1888
          %v1890 = vextract.high.u32 %v1888
          %v1891 = vmul.u32 %v1884, %v1875
          %v1892 = vadd.s32 %v1887, %v1889
          %vm1893 = vc.u32 %v1887, %v1889
          %v1894 = vadd.s32 %v1890, 1
          %v1895 = vsel %vm1893, %v1894, %v1890
          %v1896 = vadd.s32 %v1891, %v1895
          %v1897 = vadd.s32 %v1896, 536870912
          %v1898 = vshrl.u32 %v1897, 30
          %v1899 = vshll.u32 %v1898, 30
          %v1900 = vsub.s32 %v1896, %v1899
          %vm1901 = vcmp.lt.s32.totalorder %v1900, 0
          %v1902 = vsub.s32 0, %v1900
          %v1903 = vsel %vm1901, %v1902, %v1900
          %v1904 = vclz %v1903
          %v1905 = vsub.s32 %v1904, 2
          %vm1906 = vcmp.gt.s32.totalorder 0, %v1905
          %v1907 = vsel %vm1906, 0, %v1905
          %v1908 = vsub.s32 32, %v1907
          %v1909 = vshll.u32 %v1900, %v1907
          %v1910 = vshrl.u32 %v1892, %v1908
          %v1911 = vor.u32 %v1909, %v1910
          %v1912 = vsub.s32 4294967266, %v1907
          %v1913 = vadd.s32 %v1912, 127
          %v1914 = vshll.u32 %v1913, 23
          %v1915 = vor.u32 4788187, %v1914
          %v1916 = vand.u32 2147483647, %v1915
          %v1918 = vcvt.s32.f32 %v1911
          %v1919 = vmul.f32 %v1918, %v1916
          %v1920 = vxor.u32 %v1919, 2147483648
          %v1921 = vsel %vm1838, %v1920, %v1919
          %v1922 = vsub.s32 4, %v1898
          %v1923 = vsel %vm1838, %v1922, %v1898
          %v1924 = vsel %vm1837, %v1523, %v1921
          %v1925 = vsel %vm1837, 0, %v1923
          %v1926 = vcosq.f32.pop %v1924
          %v1927 = vsinq.f32.pop %v1924
          %vm1928 = vweird.f32 %v1523
          %v1929 = vadd.s32 %v1925, 3
          %v1930 = vand.u32 %v1929, 3
          %vm1931 = vcmp.lt.s32.totalorder %v1930, 2
          %vm1932 = vcmp.eq.s32.totalorder %v1930, 0
          %v1933 = vxor.u32 %v1927, 2147483648
          %v1934 = vsel %vm1932, %v1926, %v1933
          %vm1935 = vcmp.eq.s32.totalorder %v1930, 2
          %v1936 = vxor.u32 %v1926, 2147483648
          %v1937 = vsel %vm1935, %v1936, %v1927
          %v1938 = vsel %vm1931, %v1934, %v1937
          %v1939 = vsel %vm1928, nan, %v1938
          %1940 = vst [vmem:[#allocation8] sm:$0xff] %v1627
          %1941 = vst [vmem:[#allocation8 + $0x8] sm:$0xff] %v1731
          %1942 = vst [vmem:[#allocation8 + $0x10] sm:$0xff] %v1835
          %1943 = vst [vmem:[#allocation8 + $0x18] sm:$0xff] %v1939
        $region92: #{tpu_custom_call.1} parent=79 // pred_fallthru
          _
      $region80: #{tpu_custom_call.1} parent=59 // pred_fallthru
        _
      %p1944 = scmp.ge.s32.totalorder %s32, 2
      // Predicated region
      $region93: #{tpu_custom_call.1} parent=59 // pred_check
        %p1945 = pneg %p1944
      $region94: #{tpu_custom_call.1} parent=59 // pred_check_branch
        %1947 = sbr.rel (%p1945) target = $region96
      $region95: #{tpu_custom_call.1} parent=59 // pred_region
        %v1948 = vld [vmem:[#allocation8] sm:$0xff]
        %v1949 = vld [vmem:[#allocation8 + $0x8] sm:$0xff]
        %v1950 = vld [vmem:[#allocation8 + $0x10] sm:$0xff]
        %v1951 = vld [vmem:[#allocation8 + $0x18] sm:$0xff]
        %v1952 = vld [vmem:[%s3] sm:$0xff]
        %vm1953 = vcmask 261120
        %v1955 = vsel %vm1953, %v1952, 0
        %1957 = vmatprep.subr.mxu0 0.0
        %1958 = vmatpush1.msra.mxu0 %v1948
        %1959 = vmatprep.subr.mxu0 0.0
        %1960 = vmatpush1.msra.mxu0 %v1949
        %1961 = vmatprep.subr.mxu0 0.0
        %1962 = vmatpush1.msra.mxu0 %v1950
        %1963 = vmatprep.subr.mxu0 0.0
        %1964 = vmatpush1.msra.mxu0 %v1951
        %1965 = vmatprep.subr.mxu0 0.0
        %1966 = vmatpush1.msra.mxu0 0.0
        %1967 = vmatprep.subr.mxu0 0.0
        %1968 = vmatpush1.msra.mxu0 0.0
        %1969 = vmatprep.subr.mxu0 0.0
        %1970 = vmatpush1.msra.mxu0 0.0
        %1971 = vmatprep.subr.mxu0 0.0
        %1972 = vmatpush1.msra.mxu0 0.0
        %1973 = vmatprep.subr.mxu0 0.0
        %1974 = vmatpush1.msra.mxu0 0.0
        %1975 = vmatprep.subr.mxu0 0.0
        %1976 = vmatpush1.msra.mxu0 0.0
        %1977 = vmatprep.subr.mxu0 0.0
        %1978 = vmatpush1.msra.mxu0 0.0
        %1979 = vmatprep.subr.mxu0 0.0
        %1980 = vmatpush1.msra.mxu0 0.0
        %1981 = vmatprep.subr.mxu0 0.0
        %1982 = vmatpush1.msra.mxu0 0.0
        %1983 = vmatprep.subr.mxu0 0.0
        %1984 = vmatpush1.msra.mxu0 0.0
        %1985 = vmatprep.subr.mxu0 0.0
        %1986 = vmatpush1.msra.mxu0 0.0
        %1987 = vmatprep.subr.mxu0 0.0
        %1988 = vmatpush1.msra.mxu0 0.0
        %1989 = vmatprep.subr.mxu0 0.0
        %1990 = vmatpush1.msra.mxu0 0.0
        %1991 = vmatprep.subr.mxu0 0.0
        %1992 = vmatpush1.msra.mxu0 0.0
        %1993 = vmatprep.subr.mxu0 0.0
        %1994 = vmatpush1.msra.mxu0 0.0
        %1995 = vmatprep.subr.mxu0 0.0
        %1996 = vmatpush1.msra.mxu0 0.0
        %1997 = vmatprep.subr.mxu0 0.0
        %1998 = vmatpush1.msra.mxu0 0.0
        %1999 = vmatprep.subr.mxu0 0.0
        %2000 = vmatpush1.msra.mxu0 0.0
        %2001 = vmatprep.subr.mxu0 0.0
        %2002 = vmatpush1.msra.mxu0 0.0
        %2003 = vmatprep.subr.mxu0 0.0
        %2004 = vmatpush1.msra.mxu0 0.0
        %2005 = vmatprep.subr.mxu0 0.0
        %2006 = vmatpush1.msra.mxu0 0.0
        %2007 = vmatprep.subr.mxu0 0.0
        %2008 = vmatpush1.msra.mxu0 0.0
        %2009 = vmatprep.subr.mxu0 0.0
        %2010 = vmatpush1.msra.mxu0 0.0
        %2011 = vmatprep.subr.mxu0 0.0
        %2012 = vmatpush1.msra.mxu0 0.0
        %2013 = vmatprep.subr.mxu0 0.0
        %2014 = vmatpush1.msra.mxu0 0.0
        %2015 = vmatprep.subr.mxu0 0.0
        %2016 = vmatpush1.msra.mxu0 0.0
        %2017 = vmatprep.subr.mxu0 0.0
        %2018 = vmatpush1.msra.mxu0 0.0
        %2019 = vmatprep.subr.mxu0 0.0
        %2020 = vmatpush1.msra.mxu0 0.0
        %2021 = vmatprep.mubr.f32.mxu0 0.0
        %2022 = vmatmul.mubr.f32.gmra.mrb[0].mxu0 %v1955
        %v2023 = vpop.f32.mrb[0].mxu0
        %v2024 = vadd.f32 0.0, %v2023
        %v2025 = vpop.f32.mrb[0].mxu0
        %2026 = vdwg.mxu0
        %p2027 = scmp.eq.s32.totalorder %s32, 2
        // Predicated region
        $region97: #{tpu_custom_call.1} parent=95 // pred_check
          %p2028 = pneg %p2027
        $region98: #{tpu_custom_call.1} parent=95 // pred_check_branch
          %2030 = sbr.rel (%p2028) target = $region100
        $region99: #{tpu_custom_call.1} parent=95 // pred_region
          %v2031 = vmul.f32 %v2024, %v531
          %v2032 = vld [vmem:[#allocation4] sm:$0xff]
          %2033 = vadd.xlane.f32.xlu0 %v2031
          %v2034 = vpop.xlane.xlu0 %2033
          %v2035 = vadd.f32 %v2032, %v2034
          %vm2036 = vcmask 7168
          %2037 = vst.msk [vmem:[#allocation4] sm:$0xff] %vm2036, %v2035
          %v2038 = vld [vmem:[#allocation7] sm:$0xff]
          %v2039 = vmul.f32 %v2031, %v2031
          %2040 = vadd.xlane.f32.xlu0 %v2039
          %v2041 = vpop.xlane.xlu0 %2040
          %v2042 = vadd.f32 %v2038, %v2041
          %2043 = vst.msk [vmem:[#allocation7] sm:$0xff] %vm2036, %v2042
          // Predicated region
          $region101: #{tpu_custom_call.1} parent=99 // pred_check
            _
          $region102: #{tpu_custom_call.1} parent=99 // pred_check_branch
            %2045 = sbr.rel (%p501) target = $region104
          $region103: #{tpu_custom_call.1} parent=99 // pred_region
            %v2046 = vld [vmem:[#allocation4] sm:$0xff]
            %v2047 = vmul.f32 %v2046, 0.03125
            %v2048 = vld [vmem:[#allocation7] sm:$0xff]
            %v2049 = vmul.f32 %v2048, 0.03125
            %v2050 = vmul.f32 %v2047, %v2047
            %v2051 = vsub.f32 %v2049, %v2050
            %v2052 = vmax.f32 %v2051, 0.0
            %v2053 = vld [vmem:[%s6] sm:$0xff]
            %v2054 = vadd.f32 %v2052, 1e-05
            %v2055 = vrsqrt.pop %v2054
            %v2056 = vmul.f32 %v2053, %v2055
            %2057 = vst.msk [vmem:[%s12] sm:$0xff] %vm2036, %v2056
            %v2058 = vld [vmem:[%s9] sm:$0xff]
            %v2059 = vmul.f32 %v2047, %v2056
            %v2060 = vsub.f32 %v2058, %v2059
            %2061 = vst.msk [vmem:[%s15] sm:$0xff] %vm2036, %v2060
          $region104: #{tpu_custom_call.1} parent=99 // pred_fallthru
            _
        $region100: #{tpu_custom_call.1} parent=95 // pred_fallthru
          _
      $region96: #{tpu_custom_call.1} parent=59 // pred_fallthru
        _
      // Predicated region
      $region105: #{tpu_custom_call.1} parent=59 // pred_check
        %p2062 = pneg %p276
      $region106: #{tpu_custom_call.1} parent=59 // pred_check_branch
        %2064 = sbr.rel (%p2062) target = $region108
      $region107: #{tpu_custom_call.1} parent=59 // pred_region
        _
      $region108: #{tpu_custom_call.1} parent=59 // pred_fallthru
        _
      // Predicated region
      $region109: #{tpu_custom_call.1} parent=59 // pred_check
        %p2065 = pneg %p297
      $region110: #{tpu_custom_call.1} parent=59 // pred_check_branch
        %2067 = sbr.rel (%p2065) target = $region112
      $region111: #{tpu_custom_call.1} parent=59 // pred_region
        _
      $region112: #{tpu_custom_call.1} parent=59 // pred_fallthru
        _
      // Predicated region
      $region113: #{tpu_custom_call.1} parent=59 // pred_check
        %p2068 = pneg %p318
      $region114: #{tpu_custom_call.1} parent=59 // pred_check_branch
        %2070 = sbr.rel (%p2068) target = $region116
      $region115: #{tpu_custom_call.1} parent=59 // pred_region
        _
      $region116: #{tpu_custom_call.1} parent=59 // pred_fallthru
        _
      // Predicated region
      $region117: #{tpu_custom_call.1} parent=59 // pred_check
        %p2071 = pneg %p339
      $region118: #{tpu_custom_call.1} parent=59 // pred_check_branch
        %2073 = sbr.rel (%p2071) target = $region120
      $region119: #{tpu_custom_call.1} parent=59 // pred_region
        _
      $region120: #{tpu_custom_call.1} parent=59 // pred_fallthru
        _
      // Predicated region
      $region121: #{tpu_custom_call.1} parent=59 // pred_check
        %p2074 = pneg %p360
      $region122: #{tpu_custom_call.1} parent=59 // pred_check_branch
        %2076 = sbr.rel (%p2074) target = $region124
      $region123: #{tpu_custom_call.1} parent=59 // pred_region
        _
      $region124: #{tpu_custom_call.1} parent=59 // pred_fallthru
        _
      // Predicated region
      $region125: #{tpu_custom_call.1} parent=59 // pred_check
        %p2077 = pneg %p381
      $region126: #{tpu_custom_call.1} parent=59 // pred_check_branch
        %2079 = sbr.rel (%p2077) target = $region128
      $region127: #{tpu_custom_call.1} parent=59 // pred_region
        _
      $region128: #{tpu_custom_call.1} parent=59 // pred_fallthru
        _
      // Predicated region
      $region129: #{tpu_custom_call.1} parent=59 // pred_check
        %p2080 = pneg %p276
      $region130: #{tpu_custom_call.1} parent=59 // pred_check_branch
        %2082 = sbr.rel (%p2080) target = $region132
      $region131: #{tpu_custom_call.1} parent=59 // pred_region
        _
      $region132: #{tpu_custom_call.1} parent=59 // pred_fallthru
        _
      // Predicated region
      $region133: #{tpu_custom_call.1} parent=59 // pred_check
        %p2083 = pneg %p297
      $region134: #{tpu_custom_call.1} parent=59 // pred_check_branch
        %2085 = sbr.rel (%p2083) target = $region136
      $region135: #{tpu_custom_call.1} parent=59 // pred_region
        _
      $region136: #{tpu_custom_call.1} parent=59 // pred_fallthru
        _
      // Predicated region
      $region137: #{tpu_custom_call.1} parent=59 // pred_check
        %p2086 = pneg %p318
      $region138: #{tpu_custom_call.1} parent=59 // pred_check_branch
        %2088 = sbr.rel (%p2086) target = $region140
      $region139: #{tpu_custom_call.1} parent=59 // pred_region
        _
      $region140: #{tpu_custom_call.1} parent=59 // pred_fallthru
        _
      // Predicated region
      $region141: #{tpu_custom_call.1} parent=59 // pred_check
        %p2089 = pneg %p339
      $region142: #{tpu_custom_call.1} parent=59 // pred_check_branch
        %2091 = sbr.rel (%p2089) target = $region144
      $region143: #{tpu_custom_call.1} parent=59 // pred_region
        _
      $region144: #{tpu_custom_call.1} parent=59 // pred_fallthru
        _
      // Predicated region
      $region145: #{tpu_custom_call.1} parent=59 // pred_check
        %p2092 = pneg %p360
      $region146: #{tpu_custom_call.1} parent=59 // pred_check_branch
        %2094 = sbr.rel (%p2092) target = $region148
      $region147: #{tpu_custom_call.1} parent=59 // pred_region
        _
      $region148: #{tpu_custom_call.1} parent=59 // pred_fallthru
        _
      // Predicated region
      $region149: #{tpu_custom_call.1} parent=59 // pred_check
        %p2095 = pneg %p381
      $region150: #{tpu_custom_call.1} parent=59 // pred_check_branch
        %2097 = sbr.rel (%p2095) target = $region152
      $region151: #{tpu_custom_call.1} parent=59 // pred_region
        _
      $region152: #{tpu_custom_call.1} parent=59 // pred_fallthru
        _
    $region60: #{tpu_custom_call.1} parent=5 // pred_fallthru
      _
    %p2098 = scmp.le.s32.totalorder 2, %s22
    // Predicated region
    $region153: #{tpu_custom_call.1} parent=5 // pred_check
      %p2099 = pneg %p2098
    $region154: #{tpu_custom_call.1} parent=5 // pred_check_branch
      %2101 = sbr.rel (%p2099) target = $region156
    $region155: #{tpu_custom_call.1} parent=5 // pred_region
      %s2102 = ssub.s32 %s22, 2
    $region156: #{tpu_custom_call.1} parent=5 // pred_fallthru
      _
  $region6: #{tpu_custom_call.1} parent=0 // loop_footer
    %s26 = sadd.s32 1, %s22
  $region7: #{tpu_custom_call.1} parent=0 // loop_footer_branch
    %21 = sbr.rel target = $region3
  $region8: #{tpu_custom_call.1} parent=0 // loop_exit
    _

</llo_original>
